<compile_context>
chip_gen: v6e
topology: v6e:2x2x1
jax: 0.10.0
libtpu: 0.0.40
codegen_flags: <defaults>
</compile_context>

<pallas_src>
import functools

import jax
import jax.numpy as jnp
from jax import lax
from jax.experimental import pallas as pl
from jax.experimental.pallas import tpu as pltpu


# ---------------------------------------------------------------------------
# Single fused Pallas kernel for the whole forward pass.
# ---------------------------------------------------------------------------
def _fused_nn_kernel(xpad_ref, wtap_ref, wfold_ref, b1_ref, w2t_ref, b2_ref,
                     out_ref, penult_ref, *, cin, cout, h, w, kh, kw,
                     pad_h, pad_w, lane_pad, use_residual):
    hw = h * w

    # Column (width) coordinate of every flattened spatial position, used to
    # mask row-boundary contamination of the horizontally shifted taps.
    q = lax.broadcasted_iota(jnp.int32, (cin, hw), 1)
    col = q % w

    # ---- Conv2d (bias=False): lane-dense (cout, h*w) output built from
    #      kh*kw shifted-tap MXU dots on the VMEM-resident flattened input.
    conv = jnp.zeros((cout, hw), jnp.float32)
    for ki in range(kh):
        for kj in range(kw):
            dki, dkj = ki - pad_h, kj - pad_w
            start = lane_pad + dki * w + dkj          # static slice offset
            xs = xpad_ref[:, start:start + hw]        # (cin, h*w)
            if dkj < 0:
                xs = jnp.where(col >= -dkj, xs, 0.0)
            elif dkj > 0:
                xs = jnp.where(col < w - dkj, xs, 0.0)
            conv = conv + jnp.dot(wtap_ref[ki * kw + kj], xs,
                                  preferred_element_type=jnp.float32)

    # ---- ReLU (+ identity residual from the conv output), all on the VPU.
    y = jnp.maximum(conv, 0.0)
    if use_residual:
        y = y + conv

    # ---- avgpool(2x2) + flatten + linear1: pooling & flatten are folded into
    #      wfold (cout, h*w, n_hidden) at build time; accumulate per channel.
    z = b1_ref[...]                                   # (1, n_hidden)
    for c in range(cout):
        z = z + jnp.dot(y[c:c + 1, :], wfold_ref[c],
                        preferred_element_type=jnp.float32)

    # ---- ReLU -> penultimate activation, then the final linear layer.
    a1 = jnp.maximum(z, 0.0)
    penult_ref[...] = a1
    out_ref[...] = (jnp.dot(a1, w2t_ref[...],
                            preferred_element_type=jnp.float32) + b2_ref[...])


def _make_fused_forward(*, cin, cout, h, w, kh, kw, pad_h, pad_w,
                        n_hidden, n_out, lane_pad, use_residual):
    kernel = functools.partial(
        _fused_nn_kernel, cin=cin, cout=cout, h=h, w=w, kh=kh, kw=kw,
        pad_h=pad_h, pad_w=pad_w, lane_pad=lane_pad, use_residual=use_residual)

    vmem = pl.BlockSpec(memory_space=pltpu.MemorySpace.VMEM)
    call = pl.pallas_call(
        kernel,
        out_shape=(jax.ShapeDtypeStruct((1, n_out), jnp.float32),
                   jax.ShapeDtypeStruct((1, n_hidden), jnp.float32)),
        in_specs=[vmem] * 6,
        out_specs=(vmem, vmem),
    )

    @jax.jit
    def fwd(x, wtap, wfold, b1, w2t, b2):
        # Flatten spatial dims (free bitcast reshape) and lane-pad once so the
        # kernel's shifted taps are plain static contiguous slices.
        x2d = x.reshape(cin, h * w).astype(jnp.float32)
        xpad = jnp.pad(x2d, ((0, 0), (lane_pad, lane_pad)))
        return call(xpad, wtap, wfold, b1, w2t, b2)

    return fwd


# ---------------------------------------------------------------------------
# JAX mirror of the NN builder (same method surface), fused at build time.
# ---------------------------------------------------------------------------
class NNPallas:
    def __init__(self, input_shape):
        self.input_shape = input_shape
        self.layers = []            # list of (kind, params dict)
        self.residuals = {}         # end_layer -> [start_layer, ...]
        self._compiled = None

    # --- builder methods matching the PyTorch NN class -----------------------
    def conv(self, in_channels, out_channels, kernel_size, stride=(1, 1),
             padding=(0, 0), weight=None):
        self.layers.append(("conv", dict(in_channels=in_channels,
                                         out_channels=out_channels,
                                         kernel_size=kernel_size,
                                         stride=stride, padding=padding,
                                         w=weight)))
        self._compiled = None

    def relu(self):
        self.layers.append(("relu", {}))
        self._compiled = None

    def avgpool(self, kernel_size, stride=None, padding=(0, 0)):
        self.layers.append(("avgpool", dict(kernel_size=kernel_size,
                                            stride=stride, padding=padding)))
        self._compiled = None

    def flatten(self, start_dim=1, end_dim=-1):
        self.layers.append(("flatten", {}))
        self._compiled = None

    def linear(self, in_features, out_features, weight=None, bias=None):
        self.layers.append(("linear", dict(in_features=in_features,
                                           out_features=out_features,
                                           w=weight, b=bias)))
        self._compiled = None

    def residual_identity(self, start, end):
        # nn.Identity() projection branch of NN.residual (shapes equal).
        self.residuals.setdefault(end, []).append(start)
        self._compiled = None

    # --- build-time fusion ----------------------------------------------------
    def _build(self):
        kinds = [k for k, _ in self.layers]
        expected = ["conv", "relu", "avgpool", "flatten", "linear", "relu", "linear"]
        if kinds != expected or self.residuals not in ({}, {2: [1]}):
            # TODO(synk): only the representative conv->relu->(+id residual)->
            # avgpool->flatten->linear->relu->linear graph is fused here.
            raise NotImplementedError("unsupported layer graph for fused kernel")
        use_residual = bool(self.residuals)

        cin, h, w = self.input_shape
        pconv = self.layers[0][1]
        cout = pconv["out_channels"]
        kh, kw = pconv["kernel_size"]
        pad_h, pad_w = pconv["padding"]
        assert pconv["stride"] == (1, 1) and pconv["in_channels"] == cin
        assert 2 * pad_h == kh - 1 and 2 * pad_w == kw - 1, "fused conv assumes 'same' padding"

        ppool = self.layers[2][1]
        ph, pw = ppool["kernel_size"]
        stride = ppool["stride"] or ppool["kernel_size"]
        assert tuple(stride) == (ph, pw) and tuple(ppool["padding"]) == (0, 0)
        assert h % ph == 0 and w % pw == 0
        ho, wo = h // ph, w // pw

        plin1 = self.layers[4][1]
        plin2 = self.layers[6][1]
        n_hidden, n_out = plin1["out_features"], plin2["out_features"]
        assert plin1["in_features"] == cout * ho * wo
        assert plin2["in_features"] == n_hidden

        # Conv weight (O, I, KH, KW) -> per-tap (KH*KW, O, I) for shifted dots.
        wtap = jnp.transpose(jnp.asarray(pconv["w"], jnp.float32),
                             (2, 3, 0, 1)).reshape(kh * kw, cout, cin)

        # Fold avgpool + flatten into linear1:
        #   wfold[c, hp*w + wp, n] = W1[n, c*ho*wo + (hp//ph)*wo + (wp//pw)] / (ph*pw)
        w1 = jnp.asarray(plin1["w"], jnp.float32).reshape(n_hidden, cout, ho, wo)
        w1 = jnp.repeat(jnp.repeat(w1, ph, axis=2), pw, axis=3) / float(ph * pw)
        wfold = jnp.transpose(w1, (1, 2, 3, 0)).reshape(cout, h * w, n_hidden)

        b1 = jnp.asarray(plin1["b"], jnp.float32).reshape(1, n_hidden)
        w2t = jnp.asarray(plin2["w"], jnp.float32).T          # (n_hidden, n_out)
        b2 = jnp.asarray(plin2["b"], jnp.float32).reshape(1, n_out)

        lane_pad = pad_h * w + pad_w                           # max |tap shift|
        fwd = _make_fused_forward(cin=cin, cout=cout, h=h, w=w, kh=kh, kw=kw,
                                  pad_h=pad_h, pad_w=pad_w, n_hidden=n_hidden,
                                  n_out=n_out, lane_pad=lane_pad,
                                  use_residual=use_residual)
        self._compiled = (fwd, (wtap, wfold, b1, w2t, b2))

    def forward(self, x, return_penultimate=False):
        if self._compiled is None:
            self._build()
        fwd, params = self._compiled
        out, penult = fwd(x, *params)         # x is (C,H,W); batch dim of 1 is implicit
        return penult if return_penultimate else out


# ---------------------------------------------------------------------------
# Pure-JAX reference (no Pallas) for the correctness check.
# ---------------------------------------------------------------------------
def reference_forward(x, conv_w, lin1_w, lin1_b, lin2_w, lin2_b):
    x = x[None]
    outputs = [x]
    x = lax.conv_general_dilated(x, conv_w, window_strides=(1, 1),
                                 padding=((1, 1), (1, 1)),
                                 dimension_numbers=("NCHW", "OIHW", "NCHW"))
    outputs.append(x)                          # layer 0: conv
    x = jnp.maximum(x, 0.0)                    # layer 1: relu
    outputs.append(x)
    x = x + outputs[1]                         # residual (identity from layer 0 output)
    _, C, H, W = x.shape                       # layer 2: avgpool 2x2
    x = x.reshape(1, C, H // 2, 2, W // 2, 2).mean(axis=(3, 5))
    x = x.reshape(1, -1)                       # layer 3: flatten
    x = x @ lin1_w.T + lin1_b                  # layer 4: linear
    x = jnp.maximum(x, 0.0)                    # layer 5: relu
    x = x @ lin2_w.T + lin2_b                  # layer 6: linear
    return x


if __name__ == "__main__":
    key = jax.random.PRNGKey(0)
    kx, k1, k2, k3, k4, k5 = jax.random.split(key, 6)

    # NN(input_shape=(4, 16, 16)); forward receives (C, H, W) and unsqueezes.
    C, H, W = 4, 16, 16
    x = jax.random.normal(kx, (C, H, W), jnp.float32)

    conv_w = jax.random.normal(k1, (8, C, 3, 3), jnp.float32) * 0.1
    lin1_w = jax.random.normal(k2, (32, 8 * 8 * 8), jnp.float32) * 0.05
    lin1_b = jax.random.normal(k3, (32,), jnp.float32) * 0.05
    lin2_w = jax.random.normal(k4, (10, 32), jnp.float32) * 0.1
    lin2_b = jax.random.normal(k5, (10,), jnp.float32) * 0.1

    net = NNPallas(input_shape=(C, H, W))
    net.conv(C, 8, kernel_size=(3, 3), stride=(1, 1), padding=(1, 1), weight=conv_w)  # 0
    net.relu()                                                                         # 1
    net.avgpool(kernel_size=(2, 2))                                                    # 2
    net.flatten()                                                                      # 3
    net.linear(8 * 8 * 8, 32, weight=lin1_w, bias=lin1_b)                              # 4
    net.relu()                                                                         # 5
    net.linear(32, 10, weight=lin2_w, bias=lin2_b)                                     # 6
    net.residual_identity(start=1, end=2)        # identity residual (shapes match)

    out = jax.block_until_ready(net.forward(x))
    penult = jax.block_until_ready(net.forward(x, return_penultimate=True))

    ref = reference_forward(x, conv_w, lin1_w, lin1_b, lin2_w, lin2_b)
    assert out.shape == (1, 10), out.shape
    assert penult.shape == (1, 32), penult.shape
    assert jnp.allclose(out, ref, atol=1e-3, rtol=1e-3), (out, ref)

    print("KERNEL_OK")
</pallas_src>

<mosaic_0001>
module attributes {stable_mosaic.version = 11 : i64} {
  func.func @_fused_nn_kernel(%arg0: memref<4x290xf32, #tpu.memory_space<vmem>>, %arg1: memref<9x8x4xf32, #tpu.memory_space<vmem>>, %arg2: memref<8x256x32xf32, #tpu.memory_space<vmem>>, %arg3: memref<1x32xf32, #tpu.memory_space<vmem>>, %arg4: memref<32x10xf32, #tpu.memory_space<vmem>>, %arg5: memref<1x10xf32, #tpu.memory_space<vmem>>, %arg6: memref<1x10xf32, #tpu.memory_space<vmem>>, %arg7: memref<1x32xf32, #tpu.memory_space<vmem>>) attributes {dimension_semantics = [], scalar_prefetch = 0 : i64, scratch_operands = 0 : i64, tpu.core_type = #tpu.core_type<tc>} {
    %0 = tpu.iota {dimensions = array<i32: 1>} : vector<4x256xi32>
    %c16_i32 = arith.constant 16 : i32
    %c0_i32 = arith.constant 0 : i32
    %1 = arith.cmpi eq, %c16_i32, %c0_i32 : i32
    %c1_i32 = arith.constant 1 : i32
    %2 = arith.select %1, %c1_i32, %c16_i32 : i32
    %3 = vector.broadcast %2 : i32 to vector<4x256xi32>
    %4 = arith.remsi %0, %3 : vector<4x256xi32>
    %c0_i32_0 = arith.constant 0 : i32
    %5 = vector.broadcast %c0_i32_0 : i32 to vector<4x256xi32>
    %6 = arith.cmpi ne, %4, %5 : vector<4x256xi32>
    %c0_i32_1 = arith.constant 0 : i32
    %7 = vector.broadcast %c0_i32_1 : i32 to vector<4x256xi32>
    %8 = arith.cmpi slt, %4, %7 : vector<4x256xi32>
    %c0_i32_2 = arith.constant 0 : i32
    %9 = arith.cmpi slt, %2, %c0_i32_2 : i32
    %10 = vector.broadcast %9 : i1 to vector<4x256xi1>
    %11 = vector.broadcast %10 : vector<4x256xi1> to vector<4x256xi1>
    %12 = arith.xori %8, %11 : vector<4x256xi1>
    %13 = arith.andi %12, %6 : vector<4x256xi1>
    %14 = vector.broadcast %2 : i32 to vector<4x256xi32>
    %15 = arith.addi %4, %14 : vector<4x256xi32>
    %16 = arith.select %13, %15, %4 : vector<4x256xi1>, vector<4x256xi32>
    %cst = arith.constant 0.000000e+00 : f32
    %17 = vector.broadcast %cst : f32 to vector<8x256xf32>
    %c0 = arith.constant 0 : index
    %c0_3 = arith.constant 0 : index
    %18 = vector.load %arg0[%c0, %c0_3] : memref<4x290xf32, #tpu.memory_space<vmem>>, vector<4x256xf32>
    %c1_i32_4 = arith.constant 1 : i32
    %19 = vector.broadcast %c1_i32_4 : i32 to vector<4x256xi32>
    %20 = arith.cmpi sge, %16, %19 : vector<4x256xi32>
    %cst_5 = arith.constant 0.000000e+00 : f32
    %21 = vector.broadcast %cst_5 : f32 to vector<4x256xf32>
    %22 = arith.select %20, %18, %21 : vector<4x256xi1>, vector<4x256xf32>
    %c0_6 = arith.constant 0 : index
    %c0_7 = arith.constant 0 : index
    %c0_8 = arith.constant 0 : index
    %23 = vector.load %arg1[%c0_6, %c0_7, %c0_8] : memref<9x8x4xf32, #tpu.memory_space<vmem>>, vector<1x8x4xf32>
    %24 = vector.shape_cast %23 : vector<1x8x4xf32> to vector<8x4xf32>
    %cst_9 = arith.constant dense<0.000000e+00> : vector<8x256xf32>
    %25 = tpu.matmul %24, %22, %cst_9 {dimension_numbers = #tpu.dot_dimension_numbers<[1], [0], [0], [1], [0, 0, 1, 1], [], []>} : vector<8x4xf32>, vector<4x256xf32>, vector<8x256xf32> -> vector<8x256xf32>
    %26 = arith.addf %17, %25 : vector<8x256xf32>
    %c0_10 = arith.constant 0 : index
    %c1 = arith.constant 1 : index
    %27 = vector.load %arg0[%c0_10, %c1] : memref<4x290xf32, #tpu.memory_space<vmem>>, vector<4x256xf32>
    %c1_11 = arith.constant 1 : index
    %c0_12 = arith.constant 0 : index
    %c0_13 = arith.constant 0 : index
    %28 = vector.load %arg1[%c1_11, %c0_12, %c0_13] : memref<9x8x4xf32, #tpu.memory_space<vmem>>, vector<1x8x4xf32>
    %29 = vector.shape_cast %28 : vector<1x8x4xf32> to vector<8x4xf32>
    %cst_14 = arith.constant dense<0.000000e+00> : vector<8x256xf32>
    %30 = tpu.matmul %29, %27, %cst_14 {dimension_numbers = #tpu.dot_dimension_numbers<[1], [0], [0], [1], [0, 0, 1, 1], [], []>} : vector<8x4xf32>, vector<4x256xf32>, vector<8x256xf32> -> vector<8x256xf32>
    %31 = arith.addf %26, %30 : vector<8x256xf32>
    %c0_15 = arith.constant 0 : index
    %c2 = arith.constant 2 : index
    %32 = vector.load %arg0[%c0_15, %c2] : memref<4x290xf32, #tpu.memory_space<vmem>>, vector<4x256xf32>
    %c15_i32 = arith.constant 15 : i32
    %33 = vector.broadcast %c15_i32 : i32 to vector<4x256xi32>
    %34 = arith.cmpi slt, %16, %33 : vector<4x256xi32>
    %cst_16 = arith.constant 0.000000e+00 : f32
    %35 = vector.broadcast %cst_16 : f32 to vector<4x256xf32>
    %36 = arith.select %34, %32, %35 : vector<4x256xi1>, vector<4x256xf32>
    %c2_17 = arith.constant 2 : index
    %c0_18 = arith.constant 0 : index
    %c0_19 = arith.constant 0 : index
    %37 = vector.load %arg1[%c2_17, %c0_18, %c0_19] : memref<9x8x4xf32, #tpu.memory_space<vmem>>, vector<1x8x4xf32>
    %38 = vector.shape_cast %37 : vector<1x8x4xf32> to vector<8x4xf32>
    %cst_20 = arith.constant dense<0.000000e+00> : vector<8x256xf32>
    %39 = tpu.matmul %38, %36, %cst_20 {dimension_numbers = #tpu.dot_dimension_numbers<[1], [0], [0], [1], [0, 0, 1, 1], [], []>} : vector<8x4xf32>, vector<4x256xf32>, vector<8x256xf32> -> vector<8x256xf32>
    %40 = arith.addf %31, %39 : vector<8x256xf32>
    %c0_21 = arith.constant 0 : index
    %c16 = arith.constant 16 : index
    %41 = vector.load %arg0[%c0_21, %c16] : memref<4x290xf32, #tpu.memory_space<vmem>>, vector<4x256xf32>
    %c1_i32_22 = arith.constant 1 : i32
    %42 = vector.broadcast %c1_i32_22 : i32 to vector<4x256xi32>
    %43 = arith.cmpi sge, %16, %42 : vector<4x256xi32>
    %cst_23 = arith.constant 0.000000e+00 : f32
    %44 = vector.broadcast %cst_23 : f32 to vector<4x256xf32>
    %45 = arith.select %43, %41, %44 : vector<4x256xi1>, vector<4x256xf32>
    %c3 = arith.constant 3 : index
    %c0_24 = arith.constant 0 : index
    %c0_25 = arith.constant 0 : index
    %46 = vector.load %arg1[%c3, %c0_24, %c0_25] : memref<9x8x4xf32, #tpu.memory_space<vmem>>, vector<1x8x4xf32>
    %47 = vector.shape_cast %46 : vector<1x8x4xf32> to vector<8x4xf32>
    %cst_26 = arith.constant dense<0.000000e+00> : vector<8x256xf32>
    %48 = tpu.matmul %47, %45, %cst_26 {dimension_numbers = #tpu.dot_dimension_numbers<[1], [0], [0], [1], [0, 0, 1, 1], [], []>} : vector<8x4xf32>, vector<4x256xf32>, vector<8x256xf32> -> vector<8x256xf32>
    %49 = arith.addf %40, %48 : vector<8x256xf32>
    %c0_27 = arith.constant 0 : index
    %c17 = arith.constant 17 : index
    %50 = vector.load %arg0[%c0_27, %c17] : memref<4x290xf32, #tpu.memory_space<vmem>>, vector<4x256xf32>
    %c4 = arith.constant 4 : index
    %c0_28 = arith.constant 0 : index
    %c0_29 = arith.constant 0 : index
    %51 = vector.load %arg1[%c4, %c0_28, %c0_29] : memref<9x8x4xf32, #tpu.memory_space<vmem>>, vector<1x8x4xf32>
    %52 = vector.shape_cast %51 : vector<1x8x4xf32> to vector<8x4xf32>
    %cst_30 = arith.constant dense<0.000000e+00> : vector<8x256xf32>
    %53 = tpu.matmul %52, %50, %cst_30 {dimension_numbers = #tpu.dot_dimension_numbers<[1], [0], [0], [1], [0, 0, 1, 1], [], []>} : vector<8x4xf32>, vector<4x256xf32>, vector<8x256xf32> -> vector<8x256xf32>
    %54 = arith.addf %49, %53 : vector<8x256xf32>
    %c0_31 = arith.constant 0 : index
    %c18 = arith.constant 18 : index
    %55 = vector.load %arg0[%c0_31, %c18] : memref<4x290xf32, #tpu.memory_space<vmem>>, vector<4x256xf32>
    %c15_i32_32 = arith.constant 15 : i32
    %56 = vector.broadcast %c15_i32_32 : i32 to vector<4x256xi32>
    %57 = arith.cmpi slt, %16, %56 : vector<4x256xi32>
    %cst_33 = arith.constant 0.000000e+00 : f32
    %58 = vector.broadcast %cst_33 : f32 to vector<4x256xf32>
    %59 = arith.select %57, %55, %58 : vector<4x256xi1>, vector<4x256xf32>
    %c5 = arith.constant 5 : index
    %c0_34 = arith.constant 0 : index
    %c0_35 = arith.constant 0 : index
    %60 = vector.load %arg1[%c5, %c0_34, %c0_35] : memref<9x8x4xf32, #tpu.memory_space<vmem>>, vector<1x8x4xf32>
    %61 = vector.shape_cast %60 : vector<1x8x4xf32> to vector<8x4xf32>
    %cst_36 = arith.constant dense<0.000000e+00> : vector<8x256xf32>
    %62 = tpu.matmul %61, %59, %cst_36 {dimension_numbers = #tpu.dot_dimension_numbers<[1], [0], [0], [1], [0, 0, 1, 1], [], []>} : vector<8x4xf32>, vector<4x256xf32>, vector<8x256xf32> -> vector<8x256xf32>
    %63 = arith.addf %54, %62 : vector<8x256xf32>
    %c0_37 = arith.constant 0 : index
    %c32 = arith.constant 32 : index
    %64 = vector.load %arg0[%c0_37, %c32] : memref<4x290xf32, #tpu.memory_space<vmem>>, vector<4x256xf32>
    %c1_i32_38 = arith.constant 1 : i32
    %65 = vector.broadcast %c1_i32_38 : i32 to vector<4x256xi32>
    %66 = arith.cmpi sge, %16, %65 : vector<4x256xi32>
    %cst_39 = arith.constant 0.000000e+00 : f32
    %67 = vector.broadcast %cst_39 : f32 to vector<4x256xf32>
    %68 = arith.select %66, %64, %67 : vector<4x256xi1>, vector<4x256xf32>
    %c6 = arith.constant 6 : index
    %c0_40 = arith.constant 0 : index
    %c0_41 = arith.constant 0 : index
    %69 = vector.load %arg1[%c6, %c0_40, %c0_41] : memref<9x8x4xf32, #tpu.memory_space<vmem>>, vector<1x8x4xf32>
    %70 = vector.shape_cast %69 : vector<1x8x4xf32> to vector<8x4xf32>
    %cst_42 = arith.constant dense<0.000000e+00> : vector<8x256xf32>
    %71 = tpu.matmul %70, %68, %cst_42 {dimension_numbers = #tpu.dot_dimension_numbers<[1], [0], [0], [1], [0, 0, 1, 1], [], []>} : vector<8x4xf32>, vector<4x256xf32>, vector<8x256xf32> -> vector<8x256xf32>
    %72 = arith.addf %63, %71 : vector<8x256xf32>
    %c0_43 = arith.constant 0 : index
    %c33 = arith.constant 33 : index
    %73 = vector.load %arg0[%c0_43, %c33] : memref<4x290xf32, #tpu.memory_space<vmem>>, vector<4x256xf32>
    %c7 = arith.constant 7 : index
    %c0_44 = arith.constant 0 : index
    %c0_45 = arith.constant 0 : index
    %74 = vector.load %arg1[%c7, %c0_44, %c0_45] : memref<9x8x4xf32, #tpu.memory_space<vmem>>, vector<1x8x4xf32>
    %75 = vector.shape_cast %74 : vector<1x8x4xf32> to vector<8x4xf32>
    %cst_46 = arith.constant dense<0.000000e+00> : vector<8x256xf32>
    %76 = tpu.matmul %75, %73, %cst_46 {dimension_numbers = #tpu.dot_dimension_numbers<[1], [0], [0], [1], [0, 0, 1, 1], [], []>} : vector<8x4xf32>, vector<4x256xf32>, vector<8x256xf32> -> vector<8x256xf32>
    %77 = arith.addf %72, %76 : vector<8x256xf32>
    %c0_47 = arith.constant 0 : index
    %c34 = arith.constant 34 : index
    %78 = vector.load %arg0[%c0_47, %c34] : memref<4x290xf32, #tpu.memory_space<vmem>>, vector<4x256xf32>
    %c15_i32_48 = arith.constant 15 : i32
    %79 = vector.broadcast %c15_i32_48 : i32 to vector<4x256xi32>
    %80 = arith.cmpi slt, %16, %79 : vector<4x256xi32>
    %cst_49 = arith.constant 0.000000e+00 : f32
    %81 = vector.broadcast %cst_49 : f32 to vector<4x256xf32>
    %82 = arith.select %80, %78, %81 : vector<4x256xi1>, vector<4x256xf32>
    %c8 = arith.constant 8 : index
    %c0_50 = arith.constant 0 : index
    %c0_51 = arith.constant 0 : index
    %83 = vector.load %arg1[%c8, %c0_50, %c0_51] : memref<9x8x4xf32, #tpu.memory_space<vmem>>, vector<1x8x4xf32>
    %84 = vector.shape_cast %83 : vector<1x8x4xf32> to vector<8x4xf32>
    %cst_52 = arith.constant dense<0.000000e+00> : vector<8x256xf32>
    %85 = tpu.matmul %84, %82, %cst_52 {dimension_numbers = #tpu.dot_dimension_numbers<[1], [0], [0], [1], [0, 0, 1, 1], [], []>} : vector<8x4xf32>, vector<4x256xf32>, vector<8x256xf32> -> vector<8x256xf32>
    %86 = arith.addf %77, %85 : vector<8x256xf32>
    %cst_53 = arith.constant 0.000000e+00 : f32
    %87 = vector.broadcast %cst_53 : f32 to vector<8x256xf32>
    %88 = arith.maximumf %86, %87 : vector<8x256xf32>
    %89 = arith.addf %88, %86 : vector<8x256xf32>
    %c0_54 = arith.constant 0 : index
    %c0_55 = arith.constant 0 : index
    %90 = vector.load %arg3[%c0_54, %c0_55] : memref<1x32xf32, #tpu.memory_space<vmem>>, vector<1x32xf32>
    %91 = vector.extract_strided_slice %89 {offsets = [0, 0], sizes = [1, 256], strides = [1, 1]} : vector<8x256xf32> to vector<1x256xf32>
    %c0_56 = arith.constant 0 : index
    %c0_57 = arith.constant 0 : index
    %c0_58 = arith.constant 0 : index
    %92 = vector.load %arg2[%c0_56, %c0_57, %c0_58] : memref<8x256x32xf32, #tpu.memory_space<vmem>>, vector<1x256x32xf32>
    %93 = vector.shape_cast %92 : vector<1x256x32xf32> to vector<256x32xf32>
    %cst_59 = arith.constant dense<0.000000e+00> : vector<1x32xf32>
    %94 = tpu.matmul %91, %93, %cst_59 {dimension_numbers = #tpu.dot_dimension_numbers<[1], [0], [0], [1], [0, 0, 1, 1], [], []>} : vector<1x256xf32>, vector<256x32xf32>, vector<1x32xf32> -> vector<1x32xf32>
    %95 = arith.addf %90, %94 : vector<1x32xf32>
    %96 = vector.extract_strided_slice %89 {offsets = [1, 0], sizes = [1, 256], strides = [1, 1]} : vector<8x256xf32> to vector<1x256xf32>
    %c1_60 = arith.constant 1 : index
    %c0_61 = arith.constant 0 : index
    %c0_62 = arith.constant 0 : index
    %97 = vector.load %arg2[%c1_60, %c0_61, %c0_62] : memref<8x256x32xf32, #tpu.memory_space<vmem>>, vector<1x256x32xf32>
    %98 = vector.shape_cast %97 : vector<1x256x32xf32> to vector<256x32xf32>
    %cst_63 = arith.constant dense<0.000000e+00> : vector<1x32xf32>
    %99 = tpu.matmul %96, %98, %cst_63 {dimension_numbers = #tpu.dot_dimension_numbers<[1], [0], [0], [1], [0, 0, 1, 1], [], []>} : vector<1x256xf32>, vector<256x32xf32>, vector<1x32xf32> -> vector<1x32xf32>
    %100 = arith.addf %95, %99 : vector<1x32xf32>
    %101 = vector.extract_strided_slice %89 {offsets = [2, 0], sizes = [1, 256], strides = [1, 1]} : vector<8x256xf32> to vector<1x256xf32>
    %c2_64 = arith.constant 2 : index
    %c0_65 = arith.constant 0 : index
    %c0_66 = arith.constant 0 : index
    %102 = vector.load %arg2[%c2_64, %c0_65, %c0_66] : memref<8x256x32xf32, #tpu.memory_space<vmem>>, vector<1x256x32xf32>
    %103 = vector.shape_cast %102 : vector<1x256x32xf32> to vector<256x32xf32>
    %cst_67 = arith.constant dense<0.000000e+00> : vector<1x32xf32>
    %104 = tpu.matmul %101, %103, %cst_67 {dimension_numbers = #tpu.dot_dimension_numbers<[1], [0], [0], [1], [0, 0, 1, 1], [], []>} : vector<1x256xf32>, vector<256x32xf32>, vector<1x32xf32> -> vector<1x32xf32>
    %105 = arith.addf %100, %104 : vector<1x32xf32>
    %106 = vector.extract_strided_slice %89 {offsets = [3, 0], sizes = [1, 256], strides = [1, 1]} : vector<8x256xf32> to vector<1x256xf32>
    %c3_68 = arith.constant 3 : index
    %c0_69 = arith.constant 0 : index
    %c0_70 = arith.constant 0 : index
    %107 = vector.load %arg2[%c3_68, %c0_69, %c0_70] : memref<8x256x32xf32, #tpu.memory_space<vmem>>, vector<1x256x32xf32>
    %108 = vector.shape_cast %107 : vector<1x256x32xf32> to vector<256x32xf32>
    %cst_71 = arith.constant dense<0.000000e+00> : vector<1x32xf32>
    %109 = tpu.matmul %106, %108, %cst_71 {dimension_numbers = #tpu.dot_dimension_numbers<[1], [0], [0], [1], [0, 0, 1, 1], [], []>} : vector<1x256xf32>, vector<256x32xf32>, vector<1x32xf32> -> vector<1x32xf32>
    %110 = arith.addf %105, %109 : vector<1x32xf32>
    %111 = vector.extract_strided_slice %89 {offsets = [4, 0], sizes = [1, 256], strides = [1, 1]} : vector<8x256xf32> to vector<1x256xf32>
    %c4_72 = arith.constant 4 : index
    %c0_73 = arith.constant 0 : index
    %c0_74 = arith.constant 0 : index
    %112 = vector.load %arg2[%c4_72, %c0_73, %c0_74] : memref<8x256x32xf32, #tpu.memory_space<vmem>>, vector<1x256x32xf32>
    %113 = vector.shape_cast %112 : vector<1x256x32xf32> to vector<256x32xf32>
    %cst_75 = arith.constant dense<0.000000e+00> : vector<1x32xf32>
    %114 = tpu.matmul %111, %113, %cst_75 {dimension_numbers = #tpu.dot_dimension_numbers<[1], [0], [0], [1], [0, 0, 1, 1], [], []>} : vector<1x256xf32>, vector<256x32xf32>, vector<1x32xf32> -> vector<1x32xf32>
    %115 = arith.addf %110, %114 : vector<1x32xf32>
    %116 = vector.extract_strided_slice %89 {offsets = [5, 0], sizes = [1, 256], strides = [1, 1]} : vector<8x256xf32> to vector<1x256xf32>
    %c5_76 = arith.constant 5 : index
    %c0_77 = arith.constant 0 : index
    %c0_78 = arith.constant 0 : index
    %117 = vector.load %arg2[%c5_76, %c0_77, %c0_78] : memref<8x256x32xf32, #tpu.memory_space<vmem>>, vector<1x256x32xf32>
    %118 = vector.shape_cast %117 : vector<1x256x32xf32> to vector<256x32xf32>
    %cst_79 = arith.constant dense<0.000000e+00> : vector<1x32xf32>
    %119 = tpu.matmul %116, %118, %cst_79 {dimension_numbers = #tpu.dot_dimension_numbers<[1], [0], [0], [1], [0, 0, 1, 1], [], []>} : vector<1x256xf32>, vector<256x32xf32>, vector<1x32xf32> -> vector<1x32xf32>
    %120 = arith.addf %115, %119 : vector<1x32xf32>
    %121 = vector.extract_strided_slice %89 {offsets = [6, 0], sizes = [1, 256], strides = [1, 1]} : vector<8x256xf32> to vector<1x256xf32>
    %c6_80 = arith.constant 6 : index
    %c0_81 = arith.constant 0 : index
    %c0_82 = arith.constant 0 : index
    %122 = vector.load %arg2[%c6_80, %c0_81, %c0_82] : memref<8x256x32xf32, #tpu.memory_space<vmem>>, vector<1x256x32xf32>
    %123 = vector.shape_cast %122 : vector<1x256x32xf32> to vector<256x32xf32>
    %cst_83 = arith.constant dense<0.000000e+00> : vector<1x32xf32>
    %124 = tpu.matmul %121, %123, %cst_83 {dimension_numbers = #tpu.dot_dimension_numbers<[1], [0], [0], [1], [0, 0, 1, 1], [], []>} : vector<1x256xf32>, vector<256x32xf32>, vector<1x32xf32> -> vector<1x32xf32>
    %125 = arith.addf %120, %124 : vector<1x32xf32>
    %126 = vector.extract_strided_slice %89 {offsets = [7, 0], sizes = [1, 256], strides = [1, 1]} : vector<8x256xf32> to vector<1x256xf32>
    %c7_84 = arith.constant 7 : index
    %c0_85 = arith.constant 0 : index
    %c0_86 = arith.constant 0 : index
    %127 = vector.load %arg2[%c7_84, %c0_85, %c0_86] : memref<8x256x32xf32, #tpu.memory_space<vmem>>, vector<1x256x32xf32>
    %128 = vector.shape_cast %127 : vector<1x256x32xf32> to vector<256x32xf32>
    %cst_87 = arith.constant dense<0.000000e+00> : vector<1x32xf32>
    %129 = tpu.matmul %126, %128, %cst_87 {dimension_numbers = #tpu.dot_dimension_numbers<[1], [0], [0], [1], [0, 0, 1, 1], [], []>} : vector<1x256xf32>, vector<256x32xf32>, vector<1x32xf32> -> vector<1x32xf32>
    %130 = arith.addf %125, %129 : vector<1x32xf32>
    %cst_88 = arith.constant 0.000000e+00 : f32
    %131 = vector.broadcast %cst_88 : f32 to vector<1x32xf32>
    %132 = arith.maximumf %130, %131 : vector<1x32xf32>
    %c0_89 = arith.constant 0 : index
    %c0_90 = arith.constant 0 : index
    %133 = vector.load %arg7[%c0_89, %c0_90] : memref<1x32xf32, #tpu.memory_space<vmem>>, vector<1x32xf32>
    tpu.vector_store %arg7[%c0_89, %c0_90], %132 {strides = array<i32>} : memref<1x32xf32, #tpu.memory_space<vmem>>, vector<1x32xf32>,
    %c0_91 = arith.constant 0 : index
    %c0_92 = arith.constant 0 : index
    %134 = vector.load %arg4[%c0_91, %c0_92] : memref<32x10xf32, #tpu.memory_space<vmem>>, vector<32x10xf32>
    %cst_93 = arith.constant dense<0.000000e+00> : vector<1x10xf32>
    %135 = tpu.matmul %132, %134, %cst_93 {dimension_numbers = #tpu.dot_dimension_numbers<[1], [0], [0], [1], [0, 0, 1, 1], [], []>} : vector<1x32xf32>, vector<32x10xf32>, vector<1x10xf32> -> vector<1x10xf32>
    %c0_94 = arith.constant 0 : index
    %c0_95 = arith.constant 0 : index
    %136 = vector.load %arg5[%c0_94, %c0_95] : memref<1x10xf32, #tpu.memory_space<vmem>>, vector<1x10xf32>
    %137 = arith.addf %135, %136 : vector<1x10xf32>
    %c0_96 = arith.constant 0 : index
    %c0_97 = arith.constant 0 : index
    %138 = vector.load %arg6[%c0_96, %c0_97] : memref<1x10xf32, #tpu.memory_space<vmem>>, vector<1x10xf32>
    tpu.vector_store %arg6[%c0_96, %c0_97], %137 {strides = array<i32>} : memref<1x10xf32, #tpu.memory_space<vmem>>, vector<1x10xf32>,
    return
  }
}

</mosaic_0001>

<llo_original>
// kernel: fwd.1
$region0: #{fwd.1}
  #allocation0 [shape = 'u32[]', space=smem, size = 0x4, offset = 0x4, fixed_abs, tag = 'smem constant byte address 0x4 - core index']
  #allocation1 [shape = 'u32[144,128]{1,0:T(1,128)}', space=vmem, size = 0x12000, scoped, tag = 'internal scratch']
  %s0 = inlined_call_operand.vmem [shape: f32[4,290], index: 0, kind: input, shape index: {}]
  %s1 = inlined_call_operand.vmem [shape: f32[9,8,4], index: 1, kind: input, shape index: {}]
  %s2 = inlined_call_operand.vmem [shape: f32[8,256,32], index: 2, kind: input, shape index: {}]
  %s3 = inlined_call_operand.vmem [shape: f32[1,32], index: 3, kind: input, shape index: {}]
  %s4 = inlined_call_operand.vmem [shape: f32[32,10], index: 4, kind: input, shape index: {}]
  %s5 = inlined_call_operand.vmem [shape: f32[1,10], index: 5, kind: input, shape index: {}]
  %s6 = inlined_call_operand.hbm [shape: f32[1,10], index: 6, kind: output, shape index: {0}]
  %s7 = inlined_call_operand.hbm [shape: f32[1,32], index: 7, kind: output, shape index: {1}]
  %8 = xla_tuple %s6, %s7
  %s9 = sld [smem:[#allocation0]]
  $region42: #{fwd.1} parent=0
    _
  %s11 = ssub.s32 1, %s9
  %s12 = scalar_select 0, %s11, %s9
  $region1: #{fwd.1} parent=0
    #allocation2 [shape = 'u8[512]{0}', space=vmem, size = 0x400, scoped, tag = 'output window, operand 0, single buffered']
    #allocation3 [shape = 's32[1]{0}', space=sflag, size = 0x4, scoped, tag = 'scoped memory for fwd.1']
    #allocation4 [shape = 'u8[512]{0}', space=vmem, size = 0x400, scoped, tag = 'output window, operand 1, single buffered']
    #allocation5 [shape = 's32[1]{0}', space=sflag, size = 0x4, scoped, tag = 'scoped memory for fwd.1']
    %13 = vsyncpa [#allocation3], 0
    %14 = vsyncpa [#allocation5], 0
    // Predicated region
    $region2: #{fwd.1} parent=1 // pred_check
      _
    $region3: #{fwd.1} parent=1 // pred_check_branch
      %16 = sbr.rel (0) target = $region5
    $region4: #{fwd.1} parent=1 // pred_region
      _
    $region5: #{fwd.1} parent=1 // pred_fallthru
      _
    // Predicated region
    $region6: #{fwd.1} parent=1 // pred_check
      _
    $region7: #{fwd.1} parent=1 // pred_check_branch
      %18 = sbr.rel (0) target = $region9
    $region8: #{fwd.1} parent=1 // pred_region
      _
    $region9: #{fwd.1} parent=1 // pred_fallthru
      _
    // Predicated region
    $region10: #{fwd.1} parent=1 // pred_check
      _
    $region11: #{fwd.1} parent=1 // pred_check_branch
      %20 = sbr.rel (0) target = $region13
    $region12: #{fwd.1} parent=1 // pred_region
      _
    $region13: #{fwd.1} parent=1 // pred_fallthru
      _
    // Predicated region
    $region14: #{fwd.1} parent=1 // pred_check
      _
    $region15: #{fwd.1} parent=1 // pred_check_branch
      %22 = sbr.rel (0) target = $region17
    $region16: #{fwd.1} parent=1 // pred_region
      _
    $region17: #{fwd.1} parent=1 // pred_fallthru
      _
    // Predicated region
    $region18: #{fwd.1} parent=1 // pred_check
      _
    $region19: #{fwd.1} parent=1 // pred_check_branch
      %24 = sbr.rel (0) target = $region21
    $region20: #{fwd.1} parent=1 // pred_region
      _
    $region21: #{fwd.1} parent=1 // pred_fallthru
      _
    // Predicated region
    $region22: #{fwd.1} parent=1 // pred_check
      _
    $region23: #{fwd.1} parent=1 // pred_check_branch
      %26 = sbr.rel (0) target = $region25
    $region24: #{fwd.1} parent=1 // pred_region
      _
    $region25: #{fwd.1} parent=1 // pred_fallthru
      _
    %v27 = vlaneseq
    %v28 = vand.u32 %v27, 127
    %v29 = vadd.s32 %v28, 128
    %vm30 = vcmp.lt.s32.totalorder %v28, 0
    %v31 = vsub.s32 0, %v28
    %v32 = vsel %vm30, %v31, %v28
    %v33 = vshrl.u32 %v32, 4
    %v34 = vand.u32 %v32, 15
    %v35 = vsub.s32 0, %v34
    %v36 = vsel %vm30, %v35, %v34
    %vm37 = vcmp.lt.s32.totalorder %v29, 0
    %v38 = vsub.s32 0, %v29
    %v39 = vsel %vm37, %v38, %v29
    %v40 = vshrl.u32 %v39, 4
    %v41 = vand.u32 %v39, 15
    %v42 = vsub.s32 0, %v41
    %v43 = vsel %vm37, %v42, %v41
    %vm44 = vcmp.ne.s32.totalorder %v36, 0
    %vm45 = vcmp.ne.s32.totalorder %v43, 0
    %vm46 = vcmp.lt.s32.totalorder %v36, 0
    %vm47 = vcmp.lt.s32.totalorder %v43, 0
    %vm48 = vmand %vm46, %vm44
    %vm49 = vmand %vm47, %vm45
    %v50 = vadd.s32 %v36, 16
    %v51 = vadd.s32 %v43, 16
    %v52 = vsel %vm48, %v50, %v36
    %v53 = vsel %vm49, %v51, %v43
    %v54 = vld [vmem:[%s0] sm:$0xff]
    %vm55 = vcmp.ge.s32.totalorder %v52, 1
    %vm56 = vcmp.ge.s32.totalorder %v53, 1
    %v58 = vcombine.high %v54, %v54
    %v60 = vsel %vm55, %v54, 0.0
    %v61 = vsel %vm56, %v58, 0.0
    %v62 = vld [vmem:[%s1] sm:$0xff]
    %v63 = vld [vmem:[%s0 + $0x8] sm:$0xf]
    %s64 = scalar_lea.vmem %s1, 8
    %v65 = vld [vmem:[%s64] sm:$0xff]
    %67 = vrot.lane.b32.xlu0 %v54, 127
    %v68 = vpop.permute.xlu0 %67
    %69 = vrot.lane.b32.xlu0 %v58, 127
    %v70 = vpop.permute.xlu0 %69
    %71 = vrot.lane.b32.xlu0 %v63, 127
    %v72 = vpop.permute.xlu0 %71
    %vm73 = vcmask 1039360
    %v74 = vsel %vm73, %v68, %v70
    %v75 = vsel %vm73, %v70, %v72
    %vm76 = vcmask 31744
    %v78 = vsel %vm76, %v65, 0
    %vm80 = vcmask 1043456
    %v81 = vsel %vm80, %v74, 0
    %v83 = vsel %vm80, %v75, 0
    %85 = vmatprep.subr.mxu0 0.0
    %86 = vmatpush1.msra.mxu0 0.0
    %87 = vmatprep.subr.mxu0 0.0
    %88 = vmatpush1.msra.mxu0 0.0
    %89 = vmatprep.subr.mxu0 0.0
    %90 = vmatpush1.msra.mxu0 0.0
    %91 = vmatprep.subr.mxu0 0.0
    %92 = vmatpush1.msra.mxu0 0.0
    %93 = vmatprep.subr.mxu0 0.0
    %94 = vmatpush1.msra.mxu0 0.0
    %95 = vmatprep.subr.mxu0 0.0
    %96 = vmatpush1.msra.mxu0 0.0
    %97 = vmatprep.subr.mxu0 0.0
    %98 = vmatpush1.msra.mxu0 0.0
    %99 = vmatprep.subr.mxu0 0.0
    %100 = vmatpush1.msra.mxu0 0.0
    %101 = vmatprep.subr.mxu0 0.0
    %102 = vmatpush1.msra.mxu0 0.0
    %103 = vmatprep.subr.mxu0 0.0
    %104 = vmatpush1.msra.mxu0 0.0
    %105 = vmatprep.subr.mxu0 0.0
    %106 = vmatpush1.msra.mxu0 0.0
    %107 = vmatprep.subr.mxu0 0.0
    %108 = vmatpush1.msra.mxu0 0.0
    %109 = vmatprep.subr.mxu0 0.0
    %110 = vmatpush1.msra.mxu0 0.0
    %111 = vmatprep.subr.mxu0 0.0
    %112 = vmatpush1.msra.mxu0 0.0
    %113 = vmatprep.subr.mxu0 0.0
    %114 = vmatpush1.msra.mxu0 0.0
    %115 = vmatprep.subr.mxu0 %v83
    %116 = vmatpush1.msra.mxu0 %v81
    %117 = vmatprep.subr.mxu0 0.0
    %118 = vmatpush2.msra.mxu0 0.0
    %119 = vmatprep.subr.mxu0 0.0
    %120 = vmatpush2.msra.mxu0 0.0
    %121 = vmatprep.subr.mxu0 0.0
    %122 = vmatpush2.msra.mxu0 0.0
    %123 = vmatprep.subr.mxu0 0.0
    %124 = vmatpush2.msra.mxu0 0.0
    %125 = vmatprep.subr.mxu0 0.0
    %126 = vmatpush2.msra.mxu0 0.0
    %127 = vmatprep.subr.mxu0 0.0
    %128 = vmatpush2.msra.mxu0 0.0
    %129 = vmatprep.subr.mxu0 0.0
    %130 = vmatpush2.msra.mxu0 0.0
    %131 = vmatprep.subr.mxu0 0.0
    %132 = vmatpush2.msra.mxu0 0.0
    %133 = vmatprep.subr.mxu0 0.0
    %134 = vmatpush2.msra.mxu0 0.0
    %135 = vmatprep.subr.mxu0 0.0
    %136 = vmatpush2.msra.mxu0 0.0
    %137 = vmatprep.subr.mxu0 0.0
    %138 = vmatpush2.msra.mxu0 0.0
    %139 = vmatprep.subr.mxu0 0.0
    %140 = vmatpush2.msra.mxu0 0.0
    %141 = vmatprep.subr.mxu0 0.0
    %142 = vmatpush2.msra.mxu0 0.0
    %143 = vmatprep.subr.mxu0 0.0
    %144 = vmatpush2.msra.mxu0 0.0
    %145 = vmatprep.subr.mxu0 0.0
    %146 = vmatpush2.msra.mxu0 0.0
    %147 = vmatprep.subr.mxu0 0.0
    %148 = vmatpush2.msra.mxu0 0.0
    %149 = vmatprep.mubr.f32.mxu0 0.0
    %150 = vmatmul.mubr.f32.gmra.mxu0 %v78
    %v151 = vpop.f32.mrf.mxu0
    %v152 = vadd.f32 0.0, %v151
    %v153 = vpop.f32.mrf.mxu0
    %v154 = vadd.f32 0.0, %v153
    %155 = vdwg.mxu0
    %v157 = vsel %vm76, %v62, 0
    %v160 = vsel %vm80, %v60, 0
    %v163 = vsel %vm80, %v61, 0
    %165 = vmatprep.subr.mxu0 0.0
    %166 = vmatpush1.msra.mxu0 0.0
    %167 = vmatprep.subr.mxu0 0.0
    %168 = vmatpush1.msra.mxu0 0.0
    %169 = vmatprep.subr.mxu0 0.0
    %170 = vmatpush1.msra.mxu0 0.0
    %171 = vmatprep.subr.mxu0 0.0
    %172 = vmatpush1.msra.mxu0 0.0
    %173 = vmatprep.subr.mxu0 0.0
    %174 = vmatpush1.msra.mxu0 0.0
    %175 = vmatprep.subr.mxu0 0.0
    %176 = vmatpush1.msra.mxu0 0.0
    %177 = vmatprep.subr.mxu0 0.0
    %178 = vmatpush1.msra.mxu0 0.0
    %179 = vmatprep.subr.mxu0 0.0
    %180 = vmatpush1.msra.mxu0 0.0
    %181 = vmatprep.subr.mxu0 0.0
    %182 = vmatpush1.msra.mxu0 0.0
    %183 = vmatprep.subr.mxu0 0.0
    %184 = vmatpush1.msra.mxu0 0.0
    %185 = vmatprep.subr.mxu0 0.0
    %186 = vmatpush1.msra.mxu0 0.0
    %187 = vmatprep.subr.mxu0 0.0
    %188 = vmatpush1.msra.mxu0 0.0
    %189 = vmatprep.subr.mxu0 0.0
    %190 = vmatpush1.msra.mxu0 0.0
    %191 = vmatprep.subr.mxu0 0.0
    %192 = vmatpush1.msra.mxu0 0.0
    %193 = vmatprep.subr.mxu0 0.0
    %194 = vmatpush1.msra.mxu0 0.0
    %195 = vmatprep.subr.mxu0 %v163
    %196 = vmatpush1.msra.mxu0 %v160
    %197 = vmatprep.subr.mxu0 0.0
    %198 = vmatpush2.msra.mxu0 0.0
    %199 = vmatprep.subr.mxu0 0.0
    %200 = vmatpush2.msra.mxu0 0.0
    %201 = vmatprep.subr.mxu0 0.0
    %202 = vmatpush2.msra.mxu0 0.0
    %203 = vmatprep.subr.mxu0 0.0
    %204 = vmatpush2.msra.mxu0 0.0
    %205 = vmatprep.subr.mxu0 0.0
    %206 = vmatpush2.msra.mxu0 0.0
    %207 = vmatprep.subr.mxu0 0.0
    %208 = vmatpush2.msra.mxu0 0.0
    %209 = vmatprep.subr.mxu0 0.0
    %210 = vmatpush2.msra.mxu0 0.0
    %211 = vmatprep.subr.mxu0 0.0
    %212 = vmatpush2.msra.mxu0 0.0
    %213 = vmatprep.subr.mxu0 0.0
    %214 = vmatpush2.msra.mxu0 0.0
    %215 = vmatprep.subr.mxu0 0.0
    %216 = vmatpush2.msra.mxu0 0.0
    %217 = vmatprep.subr.mxu0 0.0
    %218 = vmatpush2.msra.mxu0 0.0
    %219 = vmatprep.subr.mxu0 0.0
    %220 = vmatpush2.msra.mxu0 0.0
    %221 = vmatprep.subr.mxu0 0.0
    %222 = vmatpush2.msra.mxu0 0.0
    %223 = vmatprep.subr.mxu0 0.0
    %224 = vmatpush2.msra.mxu0 0.0
    %225 = vmatprep.subr.mxu0 0.0
    %226 = vmatpush2.msra.mxu0 0.0
    %227 = vmatprep.subr.mxu0 0.0
    %228 = vmatpush2.msra.mxu0 0.0
    %229 = vmatprep.mubr.f32.mxu0 0.0
    %230 = vmatmul.mubr.f32.gmra.mxu0 %v157
    %v231 = vpop.f32.mrf.mxu0
    %v232 = vadd.f32 %v152, %v231
    %v233 = vpop.f32.mrf.mxu0
    %v234 = vadd.f32 %v154, %v233
    %235 = vdwg.mxu0
    %v236 = vld [vmem:[%s0] sm:$0xff]
    %v237 = vld [vmem:[%s0 + $0x8] sm:$0xf]
    %vm238 = vcmp.lt.s32.totalorder %v52, 15
    %vm239 = vcmp.lt.s32.totalorder %v53, 15
    %v242 = vcombine.high %v236, %v236
    %243 = vrot.lane.b32.xlu0 %v236, 126
    %v244 = vpop.permute.xlu0 %243
    %245 = vrot.lane.b32.xlu0 %v242, 126
    %v246 = vpop.permute.xlu0 %245
    %247 = vrot.lane.b32.xlu0 %v237, 126
    %v248 = vpop.permute.xlu0 %247
    %vm249 = vcmask 1031168
    %v250 = vsel %vm249, %v244, %v246
    %v251 = vsel %vm249, %v246, %v248
    %v254 = vsel %vm238, %v250, 0.0
    %v255 = vsel %vm239, %v251, 0.0
    %s256 = scalar_lea.vmem %s1, 16
    %v257 = vld [vmem:[%s256] sm:$0xff]
    %v259 = vsel %vm76, %v257, 0
    %v262 = vsel %vm80, %v254, 0
    %v265 = vsel %vm80, %v255, 0
    %267 = vmatprep.subr.mxu0 0.0
    %268 = vmatpush1.msra.mxu0 0.0
    %269 = vmatprep.subr.mxu0 0.0
    %270 = vmatpush1.msra.mxu0 0.0
    %271 = vmatprep.subr.mxu0 0.0
    %272 = vmatpush1.msra.mxu0 0.0
    %273 = vmatprep.subr.mxu0 0.0
    %274 = vmatpush1.msra.mxu0 0.0
    %275 = vmatprep.subr.mxu0 0.0
    %276 = vmatpush1.msra.mxu0 0.0
    %277 = vmatprep.subr.mxu0 0.0
    %278 = vmatpush1.msra.mxu0 0.0
    %279 = vmatprep.subr.mxu0 0.0
    %280 = vmatpush1.msra.mxu0 0.0
    %281 = vmatprep.subr.mxu0 0.0
    %282 = vmatpush1.msra.mxu0 0.0
    %283 = vmatprep.subr.mxu0 0.0
    %284 = vmatpush1.msra.mxu0 0.0
    %285 = vmatprep.subr.mxu0 0.0
    %286 = vmatpush1.msra.mxu0 0.0
    %287 = vmatprep.subr.mxu0 0.0
    %288 = vmatpush1.msra.mxu0 0.0
    %289 = vmatprep.subr.mxu0 0.0
    %290 = vmatpush1.msra.mxu0 0.0
    %291 = vmatprep.subr.mxu0 0.0
    %292 = vmatpush1.msra.mxu0 0.0
    %293 = vmatprep.subr.mxu0 0.0
    %294 = vmatpush1.msra.mxu0 0.0
    %295 = vmatprep.subr.mxu0 0.0
    %296 = vmatpush1.msra.mxu0 0.0
    %297 = vmatprep.subr.mxu0 %v265
    %298 = vmatpush1.msra.mxu0 %v262
    %299 = vmatprep.subr.mxu0 0.0
    %300 = vmatpush2.msra.mxu0 0.0
    %301 = vmatprep.subr.mxu0 0.0
    %302 = vmatpush2.msra.mxu0 0.0
    %303 = vmatprep.subr.mxu0 0.0
    %304 = vmatpush2.msra.mxu0 0.0
    %305 = vmatprep.subr.mxu0 0.0
    %306 = vmatpush2.msra.mxu0 0.0
    %307 = vmatprep.subr.mxu0 0.0
    %308 = vmatpush2.msra.mxu0 0.0
    %309 = vmatprep.subr.mxu0 0.0
    %310 = vmatpush2.msra.mxu0 0.0
    %311 = vmatprep.subr.mxu0 0.0
    %312 = vmatpush2.msra.mxu0 0.0
    %313 = vmatprep.subr.mxu0 0.0
    %314 = vmatpush2.msra.mxu0 0.0
    %315 = vmatprep.subr.mxu0 0.0
    %316 = vmatpush2.msra.mxu0 0.0
    %317 = vmatprep.subr.mxu0 0.0
    %318 = vmatpush2.msra.mxu0 0.0
    %319 = vmatprep.subr.mxu0 0.0
    %320 = vmatpush2.msra.mxu0 0.0
    %321 = vmatprep.subr.mxu0 0.0
    %322 = vmatpush2.msra.mxu0 0.0
    %323 = vmatprep.subr.mxu0 0.0
    %324 = vmatpush2.msra.mxu0 0.0
    %325 = vmatprep.subr.mxu0 0.0
    %326 = vmatpush2.msra.mxu0 0.0
    %327 = vmatprep.subr.mxu0 0.0
    %328 = vmatpush2.msra.mxu0 0.0
    %329 = vmatprep.subr.mxu0 0.0
    %330 = vmatpush2.msra.mxu0 0.0
    %331 = vmatprep.mubr.f32.mxu0 0.0
    %332 = vmatmul.mubr.f32.gmra.mxu0 %v259
    %v333 = vpop.f32.mrf.mxu0
    %v334 = vadd.f32 0.0, %v333
    %v335 = vpop.f32.mrf.mxu0
    %v336 = vadd.f32 0.0, %v335
    %337 = vdwg.mxu0
    %v338 = vadd.f32 %v232, %v334
    %v339 = vadd.f32 %v234, %v336
    %v340 = vld [vmem:[%s0] sm:$0xff]
    %v341 = vld [vmem:[%s0 + $0x8] sm:$0xf]
    %v344 = vcombine.high %v340, %v340
    %345 = vrot.lane.b32.xlu0 %v340, 112
    %v346 = vpop.permute.xlu0 %345
    %347 = vrot.lane.b32.xlu0 %v344, 112
    %v348 = vpop.permute.xlu0 %347
    %349 = vrot.lane.b32.xlu0 %v341, 112
    %v350 = vpop.permute.xlu0 %349
    %vm351 = vcmask 916480
    %v352 = vsel %vm351, %v346, %v348
    %v353 = vsel %vm351, %v348, %v350
    %v356 = vsel %vm55, %v352, 0.0
    %v357 = vsel %vm56, %v353, 0.0
    %s358 = scalar_lea.vmem %s1, 24
    %v359 = vld [vmem:[%s358] sm:$0xff]
    %v361 = vsel %vm76, %v359, 0
    %v364 = vsel %vm80, %v356, 0
    %v367 = vsel %vm80, %v357, 0
    %369 = vmatprep.subr.mxu0 0.0
    %370 = vmatpush1.msra.mxu0 0.0
    %371 = vmatprep.subr.mxu0 0.0
    %372 = vmatpush1.msra.mxu0 0.0
    %373 = vmatprep.subr.mxu0 0.0
    %374 = vmatpush1.msra.mxu0 0.0
    %375 = vmatprep.subr.mxu0 0.0
    %376 = vmatpush1.msra.mxu0 0.0
    %377 = vmatprep.subr.mxu0 0.0
    %378 = vmatpush1.msra.mxu0 0.0
    %379 = vmatprep.subr.mxu0 0.0
    %380 = vmatpush1.msra.mxu0 0.0
    %381 = vmatprep.subr.mxu0 0.0
    %382 = vmatpush1.msra.mxu0 0.0
    %383 = vmatprep.subr.mxu0 0.0
    %384 = vmatpush1.msra.mxu0 0.0
    %385 = vmatprep.subr.mxu0 0.0
    %386 = vmatpush1.msra.mxu0 0.0
    %387 = vmatprep.subr.mxu0 0.0
    %388 = vmatpush1.msra.mxu0 0.0
    %389 = vmatprep.subr.mxu0 0.0
    %390 = vmatpush1.msra.mxu0 0.0
    %391 = vmatprep.subr.mxu0 0.0
    %392 = vmatpush1.msra.mxu0 0.0
    %393 = vmatprep.subr.mxu0 0.0
    %394 = vmatpush1.msra.mxu0 0.0
    %395 = vmatprep.subr.mxu0 0.0
    %396 = vmatpush1.msra.mxu0 0.0
    %397 = vmatprep.subr.mxu0 0.0
    %398 = vmatpush1.msra.mxu0 0.0
    %399 = vmatprep.subr.mxu0 %v367
    %400 = vmatpush1.msra.mxu0 %v364
    %401 = vmatprep.subr.mxu0 0.0
    %402 = vmatpush2.msra.mxu0 0.0
    %403 = vmatprep.subr.mxu0 0.0
    %404 = vmatpush2.msra.mxu0 0.0
    %405 = vmatprep.subr.mxu0 0.0
    %406 = vmatpush2.msra.mxu0 0.0
    %407 = vmatprep.subr.mxu0 0.0
    %408 = vmatpush2.msra.mxu0 0.0
    %409 = vmatprep.subr.mxu0 0.0
    %410 = vmatpush2.msra.mxu0 0.0
    %411 = vmatprep.subr.mxu0 0.0
    %412 = vmatpush2.msra.mxu0 0.0
    %413 = vmatprep.subr.mxu0 0.0
    %414 = vmatpush2.msra.mxu0 0.0
    %415 = vmatprep.subr.mxu0 0.0
    %416 = vmatpush2.msra.mxu0 0.0
    %417 = vmatprep.subr.mxu0 0.0
    %418 = vmatpush2.msra.mxu0 0.0
    %419 = vmatprep.subr.mxu0 0.0
    %420 = vmatpush2.msra.mxu0 0.0
    %421 = vmatprep.subr.mxu0 0.0
    %422 = vmatpush2.msra.mxu0 0.0
    %423 = vmatprep.subr.mxu0 0.0
    %424 = vmatpush2.msra.mxu0 0.0
    %425 = vmatprep.subr.mxu0 0.0
    %426 = vmatpush2.msra.mxu0 0.0
    %427 = vmatprep.subr.mxu0 0.0
    %428 = vmatpush2.msra.mxu0 0.0
    %429 = vmatprep.subr.mxu0 0.0
    %430 = vmatpush2.msra.mxu0 0.0
    %431 = vmatprep.subr.mxu0 0.0
    %432 = vmatpush2.msra.mxu0 0.0
    %433 = vmatprep.mubr.f32.mxu0 0.0
    %434 = vmatmul.mubr.f32.gmra.mxu0 %v361
    %v435 = vpop.f32.mrf.mxu0
    %v436 = vadd.f32 0.0, %v435
    %v437 = vpop.f32.mrf.mxu0
    %v438 = vadd.f32 0.0, %v437
    %439 = vdwg.mxu0
    %v440 = vadd.f32 %v338, %v436
    %v441 = vadd.f32 %v339, %v438
    %v442 = vld [vmem:[%s0] sm:$0xff]
    %v443 = vld [vmem:[%s0 + $0x8] sm:$0xf]
    %s444 = scalar_lea.vmem %s1, 32
    %v445 = vld [vmem:[%s444] sm:$0xff]
    %v448 = vcombine.high %v442, %v442
    %449 = vrot.lane.b32.xlu0 %v442, 111
    %v450 = vpop.permute.xlu0 %449
    %451 = vrot.lane.b32.xlu0 %v448, 111
    %v452 = vpop.permute.xlu0 %451
    %453 = vrot.lane.b32.xlu0 %v443, 111
    %v454 = vpop.permute.xlu0 %453
    %vm455 = vcmask 908288
    %v456 = vsel %vm455, %v450, %v452
    %v457 = vsel %vm455, %v452, %v454
    %v459 = vsel %vm76, %v445, 0
    %v461 = vsel %vm80, %v456, 0
    %v463 = vsel %vm80, %v457, 0
    %465 = vmatprep.subr.mxu0 0.0
    %466 = vmatpush1.msra.mxu0 0.0
    %467 = vmatprep.subr.mxu0 0.0
    %468 = vmatpush1.msra.mxu0 0.0
    %469 = vmatprep.subr.mxu0 0.0
    %470 = vmatpush1.msra.mxu0 0.0
    %471 = vmatprep.subr.mxu0 0.0
    %472 = vmatpush1.msra.mxu0 0.0
    %473 = vmatprep.subr.mxu0 0.0
    %474 = vmatpush1.msra.mxu0 0.0
    %475 = vmatprep.subr.mxu0 0.0
    %476 = vmatpush1.msra.mxu0 0.0
    %477 = vmatprep.subr.mxu0 0.0
    %478 = vmatpush1.msra.mxu0 0.0
    %479 = vmatprep.subr.mxu0 0.0
    %480 = vmatpush1.msra.mxu0 0.0
    %481 = vmatprep.subr.mxu0 0.0
    %482 = vmatpush1.msra.mxu0 0.0
    %483 = vmatprep.subr.mxu0 0.0
    %484 = vmatpush1.msra.mxu0 0.0
    %485 = vmatprep.subr.mxu0 0.0
    %486 = vmatpush1.msra.mxu0 0.0
    %487 = vmatprep.subr.mxu0 0.0
    %488 = vmatpush1.msra.mxu0 0.0
    %489 = vmatprep.subr.mxu0 0.0
    %490 = vmatpush1.msra.mxu0 0.0
    %491 = vmatprep.subr.mxu0 0.0
    %492 = vmatpush1.msra.mxu0 0.0
    %493 = vmatprep.subr.mxu0 0.0
    %494 = vmatpush1.msra.mxu0 0.0
    %495 = vmatprep.subr.mxu0 %v463
    %496 = vmatpush1.msra.mxu0 %v461
    %497 = vmatprep.subr.mxu0 0.0
    %498 = vmatpush2.msra.mxu0 0.0
    %499 = vmatprep.subr.mxu0 0.0
    %500 = vmatpush2.msra.mxu0 0.0
    %501 = vmatprep.subr.mxu0 0.0
    %502 = vmatpush2.msra.mxu0 0.0
    %503 = vmatprep.subr.mxu0 0.0
    %504 = vmatpush2.msra.mxu0 0.0
    %505 = vmatprep.subr.mxu0 0.0
    %506 = vmatpush2.msra.mxu0 0.0
    %507 = vmatprep.subr.mxu0 0.0
    %508 = vmatpush2.msra.mxu0 0.0
    %509 = vmatprep.subr.mxu0 0.0
    %510 = vmatpush2.msra.mxu0 0.0
    %511 = vmatprep.subr.mxu0 0.0
    %512 = vmatpush2.msra.mxu0 0.0
    %513 = vmatprep.subr.mxu0 0.0
    %514 = vmatpush2.msra.mxu0 0.0
    %515 = vmatprep.subr.mxu0 0.0
    %516 = vmatpush2.msra.mxu0 0.0
    %517 = vmatprep.subr.mxu0 0.0
    %518 = vmatpush2.msra.mxu0 0.0
    %519 = vmatprep.subr.mxu0 0.0
    %520 = vmatpush2.msra.mxu0 0.0
    %521 = vmatprep.subr.mxu0 0.0
    %522 = vmatpush2.msra.mxu0 0.0
    %523 = vmatprep.subr.mxu0 0.0
    %524 = vmatpush2.msra.mxu0 0.0
    %525 = vmatprep.subr.mxu0 0.0
    %526 = vmatpush2.msra.mxu0 0.0
    %527 = vmatprep.subr.mxu0 0.0
    %528 = vmatpush2.msra.mxu0 0.0
    %529 = vmatprep.mubr.f32.mxu0 0.0
    %530 = vmatmul.mubr.f32.gmra.mxu0 %v459
    %v531 = vpop.f32.mrf.mxu0
    %v532 = vadd.f32 0.0, %v531
    %v533 = vpop.f32.mrf.mxu0
    %v534 = vadd.f32 0.0, %v533
    %535 = vdwg.mxu0
    %v536 = vadd.f32 %v440, %v532
    %v537 = vadd.f32 %v441, %v534
    %v538 = vld [vmem:[%s0] sm:$0xff]
    %v539 = vld [vmem:[%s0 + $0x8] sm:$0xf]
    %v542 = vcombine.high %v538, %v538
    %543 = vrot.lane.b32.xlu0 %v538, 110
    %v544 = vpop.permute.xlu0 %543
    %545 = vrot.lane.b32.xlu0 %v542, 110
    %v546 = vpop.permute.xlu0 %545
    %547 = vrot.lane.b32.xlu0 %v539, 110
    %v548 = vpop.permute.xlu0 %547
    %vm549 = vcmask 900096
    %v550 = vsel %vm549, %v544, %v546
    %v551 = vsel %vm549, %v546, %v548
    %v554 = vsel %vm238, %v550, 0.0
    %v555 = vsel %vm239, %v551, 0.0
    %s556 = scalar_lea.vmem %s1, 40
    %v557 = vld [vmem:[%s556] sm:$0xff]
    %v559 = vsel %vm76, %v557, 0
    %v562 = vsel %vm80, %v554, 0
    %v565 = vsel %vm80, %v555, 0
    %567 = vmatprep.subr.mxu0 0.0
    %568 = vmatpush1.msra.mxu0 0.0
    %569 = vmatprep.subr.mxu0 0.0
    %570 = vmatpush1.msra.mxu0 0.0
    %571 = vmatprep.subr.mxu0 0.0
    %572 = vmatpush1.msra.mxu0 0.0
    %573 = vmatprep.subr.mxu0 0.0
    %574 = vmatpush1.msra.mxu0 0.0
    %575 = vmatprep.subr.mxu0 0.0
    %576 = vmatpush1.msra.mxu0 0.0
    %577 = vmatprep.subr.mxu0 0.0
    %578 = vmatpush1.msra.mxu0 0.0
    %579 = vmatprep.subr.mxu0 0.0
    %580 = vmatpush1.msra.mxu0 0.0
    %581 = vmatprep.subr.mxu0 0.0
    %582 = vmatpush1.msra.mxu0 0.0
    %583 = vmatprep.subr.mxu0 0.0
    %584 = vmatpush1.msra.mxu0 0.0
    %585 = vmatprep.subr.mxu0 0.0
    %586 = vmatpush1.msra.mxu0 0.0
    %587 = vmatprep.subr.mxu0 0.0
    %588 = vmatpush1.msra.mxu0 0.0
    %589 = vmatprep.subr.mxu0 0.0
    %590 = vmatpush1.msra.mxu0 0.0
    %591 = vmatprep.subr.mxu0 0.0
    %592 = vmatpush1.msra.mxu0 0.0
    %593 = vmatprep.subr.mxu0 0.0
    %594 = vmatpush1.msra.mxu0 0.0
    %595 = vmatprep.subr.mxu0 0.0
    %596 = vmatpush1.msra.mxu0 0.0
    %597 = vmatprep.subr.mxu0 %v565
    %598 = vmatpush1.msra.mxu0 %v562
    %599 = vmatprep.subr.mxu0 0.0
    %600 = vmatpush2.msra.mxu0 0.0
    %601 = vmatprep.subr.mxu0 0.0
    %602 = vmatpush2.msra.mxu0 0.0
    %603 = vmatprep.subr.mxu0 0.0
    %604 = vmatpush2.msra.mxu0 0.0
    %605 = vmatprep.subr.mxu0 0.0
    %606 = vmatpush2.msra.mxu0 0.0
    %607 = vmatprep.subr.mxu0 0.0
    %608 = vmatpush2.msra.mxu0 0.0
    %609 = vmatprep.subr.mxu0 0.0
    %610 = vmatpush2.msra.mxu0 0.0
    %611 = vmatprep.subr.mxu0 0.0
    %612 = vmatpush2.msra.mxu0 0.0
    %613 = vmatprep.subr.mxu0 0.0
    %614 = vmatpush2.msra.mxu0 0.0
    %615 = vmatprep.subr.mxu0 0.0
    %616 = vmatpush2.msra.mxu0 0.0
    %617 = vmatprep.subr.mxu0 0.0
    %618 = vmatpush2.msra.mxu0 0.0
    %619 = vmatprep.subr.mxu0 0.0
    %620 = vmatpush2.msra.mxu0 0.0
    %621 = vmatprep.subr.mxu0 0.0
    %622 = vmatpush2.msra.mxu0 0.0
    %623 = vmatprep.subr.mxu0 0.0
    %624 = vmatpush2.msra.mxu0 0.0
    %625 = vmatprep.subr.mxu0 0.0
    %626 = vmatpush2.msra.mxu0 0.0
    %627 = vmatprep.subr.mxu0 0.0
    %628 = vmatpush2.msra.mxu0 0.0
    %629 = vmatprep.subr.mxu0 0.0
    %630 = vmatpush2.msra.mxu0 0.0
    %631 = vmatprep.mubr.f32.mxu0 0.0
    %632 = vmatmul.mubr.f32.gmra.mxu0 %v559
    %v633 = vpop.f32.mrf.mxu0
    %v634 = vadd.f32 0.0, %v633
    %v635 = vpop.f32.mrf.mxu0
    %v636 = vadd.f32 0.0, %v635
    %637 = vdwg.mxu0
    %v638 = vadd.f32 %v536, %v634
    %v639 = vadd.f32 %v537, %v636
    %v640 = vld [vmem:[%s0] sm:$0xff]
    %v641 = vld [vmem:[%s0 + $0x8] sm:$0xf]
    %v644 = vcombine.high %v640, %v640
    %645 = vrot.lane.b32.xlu0 %v640, 96
    %v646 = vpop.permute.xlu0 %645
    %647 = vrot.lane.b32.xlu0 %v644, 96
    %v648 = vpop.permute.xlu0 %647
    %649 = vrot.lane.b32.xlu0 %v641, 96
    %v650 = vpop.permute.xlu0 %649
    %vm651 = vcmask 785408
    %v652 = vsel %vm651, %v646, %v648
    %v653 = vsel %vm651, %v648, %v650
    %v656 = vsel %vm55, %v652, 0.0
    %v657 = vsel %vm56, %v653, 0.0
    %s658 = scalar_lea.vmem %s1, 48
    %v659 = vld [vmem:[%s658] sm:$0xff]
    %v661 = vsel %vm76, %v659, 0
    %v664 = vsel %vm80, %v656, 0
    %v667 = vsel %vm80, %v657, 0
    %669 = vmatprep.subr.mxu0 0.0
    %670 = vmatpush1.msra.mxu0 0.0
    %671 = vmatprep.subr.mxu0 0.0
    %672 = vmatpush1.msra.mxu0 0.0
    %673 = vmatprep.subr.mxu0 0.0
    %674 = vmatpush1.msra.mxu0 0.0
    %675 = vmatprep.subr.mxu0 0.0
    %676 = vmatpush1.msra.mxu0 0.0
    %677 = vmatprep.subr.mxu0 0.0
    %678 = vmatpush1.msra.mxu0 0.0
    %679 = vmatprep.subr.mxu0 0.0
    %680 = vmatpush1.msra.mxu0 0.0
    %681 = vmatprep.subr.mxu0 0.0
    %682 = vmatpush1.msra.mxu0 0.0
    %683 = vmatprep.subr.mxu0 0.0
    %684 = vmatpush1.msra.mxu0 0.0
    %685 = vmatprep.subr.mxu0 0.0
    %686 = vmatpush1.msra.mxu0 0.0
    %687 = vmatprep.subr.mxu0 0.0
    %688 = vmatpush1.msra.mxu0 0.0
    %689 = vmatprep.subr.mxu0 0.0
    %690 = vmatpush1.msra.mxu0 0.0
    %691 = vmatprep.subr.mxu0 0.0
    %692 = vmatpush1.msra.mxu0 0.0
    %693 = vmatprep.subr.mxu0 0.0
    %694 = vmatpush1.msra.mxu0 0.0
    %695 = vmatprep.subr.mxu0 0.0
    %696 = vmatpush1.msra.mxu0 0.0
    %697 = vmatprep.subr.mxu0 0.0
    %698 = vmatpush1.msra.mxu0 0.0
    %699 = vmatprep.subr.mxu0 %v667
    %700 = vmatpush1.msra.mxu0 %v664
    %701 = vmatprep.subr.mxu0 0.0
    %702 = vmatpush2.msra.mxu0 0.0
    %703 = vmatprep.subr.mxu0 0.0
    %704 = vmatpush2.msra.mxu0 0.0
    %705 = vmatprep.subr.mxu0 0.0
    %706 = vmatpush2.msra.mxu0 0.0
    %707 = vmatprep.subr.mxu0 0.0
    %708 = vmatpush2.msra.mxu0 0.0
    %709 = vmatprep.subr.mxu0 0.0
    %710 = vmatpush2.msra.mxu0 0.0
    %711 = vmatprep.subr.mxu0 0.0
    %712 = vmatpush2.msra.mxu0 0.0
    %713 = vmatprep.subr.mxu0 0.0
    %714 = vmatpush2.msra.mxu0 0.0
    %715 = vmatprep.subr.mxu0 0.0
    %716 = vmatpush2.msra.mxu0 0.0
    %717 = vmatprep.subr.mxu0 0.0
    %718 = vmatpush2.msra.mxu0 0.0
    %719 = vmatprep.subr.mxu0 0.0
    %720 = vmatpush2.msra.mxu0 0.0
    %721 = vmatprep.subr.mxu0 0.0
    %722 = vmatpush2.msra.mxu0 0.0
    %723 = vmatprep.subr.mxu0 0.0
    %724 = vmatpush2.msra.mxu0 0.0
    %725 = vmatprep.subr.mxu0 0.0
    %726 = vmatpush2.msra.mxu0 0.0
    %727 = vmatprep.subr.mxu0 0.0
    %728 = vmatpush2.msra.mxu0 0.0
    %729 = vmatprep.subr.mxu0 0.0
    %730 = vmatpush2.msra.mxu0 0.0
    %731 = vmatprep.subr.mxu0 0.0
    %732 = vmatpush2.msra.mxu0 0.0
    %733 = vmatprep.mubr.f32.mxu0 0.0
    %734 = vmatmul.mubr.f32.gmra.mxu0 %v661
    %v735 = vpop.f32.mrf.mxu0
    %v736 = vadd.f32 0.0, %v735
    %v737 = vpop.f32.mrf.mxu0
    %v738 = vadd.f32 0.0, %v737
    %739 = vdwg.mxu0
    %v740 = vadd.f32 %v638, %v736
    %v741 = vadd.f32 %v639, %v738
    %v742 = vld [vmem:[%s0] sm:$0xff]
    %v743 = vld [vmem:[%s0 + $0x8] sm:$0xf]
    %s744 = scalar_lea.vmem %s1, 56
    %v745 = vld [vmem:[%s744] sm:$0xff]
    %v748 = vcombine.high %v742, %v742
    %749 = vrot.lane.b32.xlu0 %v742, 95
    %v750 = vpop.permute.xlu0 %749
    %751 = vrot.lane.b32.xlu0 %v748, 95
    %v752 = vpop.permute.xlu0 %751
    %753 = vrot.lane.b32.xlu0 %v743, 95
    %v754 = vpop.permute.xlu0 %753
    %vm755 = vcmask 777216
    %v756 = vsel %vm755, %v750, %v752
    %v757 = vsel %vm755, %v752, %v754
    %v759 = vsel %vm76, %v745, 0
    %v761 = vsel %vm80, %v756, 0
    %v763 = vsel %vm80, %v757, 0
    %765 = vmatprep.subr.mxu0 0.0
    %766 = vmatpush1.msra.mxu0 0.0
    %767 = vmatprep.subr.mxu0 0.0
    %768 = vmatpush1.msra.mxu0 0.0
    %769 = vmatprep.subr.mxu0 0.0
    %770 = vmatpush1.msra.mxu0 0.0
    %771 = vmatprep.subr.mxu0 0.0
    %772 = vmatpush1.msra.mxu0 0.0
    %773 = vmatprep.subr.mxu0 0.0
    %774 = vmatpush1.msra.mxu0 0.0
    %775 = vmatprep.subr.mxu0 0.0
    %776 = vmatpush1.msra.mxu0 0.0
    %777 = vmatprep.subr.mxu0 0.0
    %778 = vmatpush1.msra.mxu0 0.0
    %779 = vmatprep.subr.mxu0 0.0
    %780 = vmatpush1.msra.mxu0 0.0
    %781 = vmatprep.subr.mxu0 0.0
    %782 = vmatpush1.msra.mxu0 0.0
    %783 = vmatprep.subr.mxu0 0.0
    %784 = vmatpush1.msra.mxu0 0.0
    %785 = vmatprep.subr.mxu0 0.0
    %786 = vmatpush1.msra.mxu0 0.0
    %787 = vmatprep.subr.mxu0 0.0
    %788 = vmatpush1.msra.mxu0 0.0
    %789 = vmatprep.subr.mxu0 0.0
    %790 = vmatpush1.msra.mxu0 0.0
    %791 = vmatprep.subr.mxu0 0.0
    %792 = vmatpush1.msra.mxu0 0.0
    %793 = vmatprep.subr.mxu0 0.0
    %794 = vmatpush1.msra.mxu0 0.0
    %795 = vmatprep.subr.mxu0 %v763
    %796 = vmatpush1.msra.mxu0 %v761
    %797 = vmatprep.subr.mxu0 0.0
    %798 = vmatpush2.msra.mxu0 0.0
    %799 = vmatprep.subr.mxu0 0.0
    %800 = vmatpush2.msra.mxu0 0.0
    %801 = vmatprep.subr.mxu0 0.0
    %802 = vmatpush2.msra.mxu0 0.0
    %803 = vmatprep.subr.mxu0 0.0
    %804 = vmatpush2.msra.mxu0 0.0
    %805 = vmatprep.subr.mxu0 0.0
    %806 = vmatpush2.msra.mxu0 0.0
    %807 = vmatprep.subr.mxu0 0.0
    %808 = vmatpush2.msra.mxu0 0.0
    %809 = vmatprep.subr.mxu0 0.0
    %810 = vmatpush2.msra.mxu0 0.0
    %811 = vmatprep.subr.mxu0 0.0
    %812 = vmatpush2.msra.mxu0 0.0
    %813 = vmatprep.subr.mxu0 0.0
    %814 = vmatpush2.msra.mxu0 0.0
    %815 = vmatprep.subr.mxu0 0.0
    %816 = vmatpush2.msra.mxu0 0.0
    %817 = vmatprep.subr.mxu0 0.0
    %818 = vmatpush2.msra.mxu0 0.0
    %819 = vmatprep.subr.mxu0 0.0
    %820 = vmatpush2.msra.mxu0 0.0
    %821 = vmatprep.subr.mxu0 0.0
    %822 = vmatpush2.msra.mxu0 0.0
    %823 = vmatprep.subr.mxu0 0.0
    %824 = vmatpush2.msra.mxu0 0.0
    %825 = vmatprep.subr.mxu0 0.0
    %826 = vmatpush2.msra.mxu0 0.0
    %827 = vmatprep.subr.mxu0 0.0
    %828 = vmatpush2.msra.mxu0 0.0
    %829 = vmatprep.mubr.f32.mxu0 0.0
    %830 = vmatmul.mubr.f32.gmra.mxu0 %v759
    %v831 = vpop.f32.mrf.mxu0
    %v832 = vadd.f32 0.0, %v831
    %v833 = vpop.f32.mrf.mxu0
    %v834 = vadd.f32 0.0, %v833
    %835 = vdwg.mxu0
    %v836 = vadd.f32 %v740, %v832
    %v837 = vadd.f32 %v741, %v834
    %v838 = vld [vmem:[%s0] sm:$0xff]
    %v839 = vld [vmem:[%s0 + $0x8] sm:$0xf]
    %v842 = vcombine.high %v838, %v838
    %843 = vrot.lane.b32.xlu0 %v838, 94
    %v844 = vpop.permute.xlu0 %843
    %845 = vrot.lane.b32.xlu0 %v842, 94
    %v846 = vpop.permute.xlu0 %845
    %847 = vrot.lane.b32.xlu0 %v839, 94
    %v848 = vpop.permute.xlu0 %847
    %vm849 = vcmask 769024
    %v850 = vsel %vm849, %v844, %v846
    %v851 = vsel %vm849, %v846, %v848
    %v854 = vsel %vm238, %v850, 0.0
    %v855 = vsel %vm239, %v851, 0.0
    %s856 = scalar_lea.vmem %s1, 64
    %v857 = vld [vmem:[%s856] sm:$0xff]
    %v859 = vsel %vm76, %v857, 0
    %v862 = vsel %vm80, %v854, 0
    %v865 = vsel %vm80, %v855, 0
    %867 = vmatprep.subr.mxu0 0.0
    %868 = vmatpush1.msra.mxu0 0.0
    %869 = vmatprep.subr.mxu0 0.0
    %870 = vmatpush1.msra.mxu0 0.0
    %871 = vmatprep.subr.mxu0 0.0
    %872 = vmatpush1.msra.mxu0 0.0
    %873 = vmatprep.subr.mxu0 0.0
    %874 = vmatpush1.msra.mxu0 0.0
    %875 = vmatprep.subr.mxu0 0.0
    %876 = vmatpush1.msra.mxu0 0.0
    %877 = vmatprep.subr.mxu0 0.0
    %878 = vmatpush1.msra.mxu0 0.0
    %879 = vmatprep.subr.mxu0 0.0
    %880 = vmatpush1.msra.mxu0 0.0
    %881 = vmatprep.subr.mxu0 0.0
    %882 = vmatpush1.msra.mxu0 0.0
    %883 = vmatprep.subr.mxu0 0.0
    %884 = vmatpush1.msra.mxu0 0.0
    %885 = vmatprep.subr.mxu0 0.0
    %886 = vmatpush1.msra.mxu0 0.0
    %887 = vmatprep.subr.mxu0 0.0
    %888 = vmatpush1.msra.mxu0 0.0
    %889 = vmatprep.subr.mxu0 0.0
    %890 = vmatpush1.msra.mxu0 0.0
    %891 = vmatprep.subr.mxu0 0.0
    %892 = vmatpush1.msra.mxu0 0.0
    %893 = vmatprep.subr.mxu0 0.0
    %894 = vmatpush1.msra.mxu0 0.0
    %895 = vmatprep.subr.mxu0 0.0
    %896 = vmatpush1.msra.mxu0 0.0
    %897 = vmatprep.subr.mxu0 %v865
    %898 = vmatpush1.msra.mxu0 %v862
    %899 = vmatprep.subr.mxu0 0.0
    %900 = vmatpush2.msra.mxu0 0.0
    %901 = vmatprep.subr.mxu0 0.0
    %902 = vmatpush2.msra.mxu0 0.0
    %903 = vmatprep.subr.mxu0 0.0
    %904 = vmatpush2.msra.mxu0 0.0
    %905 = vmatprep.subr.mxu0 0.0
    %906 = vmatpush2.msra.mxu0 0.0
    %907 = vmatprep.subr.mxu0 0.0
    %908 = vmatpush2.msra.mxu0 0.0
    %909 = vmatprep.subr.mxu0 0.0
    %910 = vmatpush2.msra.mxu0 0.0
    %911 = vmatprep.subr.mxu0 0.0
    %912 = vmatpush2.msra.mxu0 0.0
    %913 = vmatprep.subr.mxu0 0.0
    %914 = vmatpush2.msra.mxu0 0.0
    %915 = vmatprep.subr.mxu0 0.0
    %916 = vmatpush2.msra.mxu0 0.0
    %917 = vmatprep.subr.mxu0 0.0
    %918 = vmatpush2.msra.mxu0 0.0
    %919 = vmatprep.subr.mxu0 0.0
    %920 = vmatpush2.msra.mxu0 0.0
    %921 = vmatprep.subr.mxu0 0.0
    %922 = vmatpush2.msra.mxu0 0.0
    %923 = vmatprep.subr.mxu0 0.0
    %924 = vmatpush2.msra.mxu0 0.0
    %925 = vmatprep.subr.mxu0 0.0
    %926 = vmatpush2.msra.mxu0 0.0
    %927 = vmatprep.subr.mxu0 0.0
    %928 = vmatpush2.msra.mxu0 0.0
    %929 = vmatprep.subr.mxu0 0.0
    %930 = vmatpush2.msra.mxu0 0.0
    %931 = vmatprep.mubr.f32.mxu0 0.0
    %932 = vmatmul.mubr.f32.gmra.mxu0 %v859
    %v933 = vpop.f32.mrf.mxu0
    %v934 = vadd.f32 0.0, %v933
    %v935 = vpop.f32.mrf.mxu0
    %v936 = vadd.f32 0.0, %v935
    %937 = vdwg.mxu0
    %v938 = vadd.f32 %v836, %v934
    %v939 = vadd.f32 %v837, %v936
    %v940 = vmax.f32 %v938, 0.0
    %v941 = vmax.f32 %v939, 0.0
    %v942 = vadd.f32 %v940, %v938
    %v943 = vadd.f32 %v941, %v939
    %v944 = vld [vmem:[%s3] sm:$0x1]
    %v945 = vld [vmem:[%s2] sm:$0xff]
    %v946 = vld [vmem:[%s2 + $0x8] sm:$0xff]
    %v947 = vld [vmem:[%s2 + $0x10] sm:$0xff]
    %v948 = vld [vmem:[%s2 + $0x18] sm:$0xff]
    %v949 = vld [vmem:[%s2 + $0x20] sm:$0xff]
    %v950 = vld [vmem:[%s2 + $0x28] sm:$0xff]
    %v951 = vld [vmem:[%s2 + $0x30] sm:$0xff]
    %v952 = vld [vmem:[%s2 + $0x38] sm:$0xff]
    %v953 = vld [vmem:[%s2 + $0x40] sm:$0xff]
    %v954 = vld [vmem:[%s2 + $0x48] sm:$0xff]
    %v955 = vld [vmem:[%s2 + $0x50] sm:$0xff]
    %v956 = vld [vmem:[%s2 + $0x58] sm:$0xff]
    %v957 = vld [vmem:[%s2 + $0x60] sm:$0xff]
    %v958 = vld [vmem:[%s2 + $0x68] sm:$0xff]
    %v959 = vld [vmem:[%s2 + $0x70] sm:$0xff]
    %v960 = vld [vmem:[%s2 + $0x78] sm:$0xff]
    %v961 = vld [vmem:[%s2 + $0x80] sm:$0xff]
    %v962 = vld [vmem:[%s2 + $0x88] sm:$0xff]
    %v963 = vld [vmem:[%s2 + $0x90] sm:$0xff]
    %v964 = vld [vmem:[%s2 + $0x98] sm:$0xff]
    %v965 = vld [vmem:[%s2 + $0xa0] sm:$0xff]
    %v966 = vld [vmem:[%s2 + $0xa8] sm:$0xff]
    %v967 = vld [vmem:[%s2 + $0xb0] sm:$0xff]
    %v968 = vld [vmem:[%s2 + $0xb8] sm:$0xff]
    %v969 = vld [vmem:[%s2 + $0xc0] sm:$0xff]
    %v970 = vld [vmem:[%s2 + $0xc8] sm:$0xff]
    %v971 = vld [vmem:[%s2 + $0xd0] sm:$0xff]
    %v972 = vld [vmem:[%s2 + $0xd8] sm:$0xff]
    %v973 = vld [vmem:[%s2 + $0xe0] sm:$0xff]
    %v974 = vld [vmem:[%s2 + $0xe8] sm:$0xff]
    %v975 = vld [vmem:[%s2 + $0xf0] sm:$0xff]
    %v976 = vld [vmem:[%s2 + $0xf8] sm:$0xff]
    %977 = vmatprep.subr.mxu0 0.0
    %978 = vmatpush1.msra.mxu0 %v960
    %979 = vmatprep.subr.mxu0 0.0
    %980 = vmatpush1.msra.mxu0 %v959
    %981 = vmatprep.subr.mxu0 0.0
    %982 = vmatpush1.msra.mxu0 %v958
    %983 = vmatprep.subr.mxu0 0.0
    %984 = vmatpush1.msra.mxu0 %v957
    %985 = vmatprep.subr.mxu0 0.0
    %986 = vmatpush1.msra.mxu0 %v956
    %987 = vmatprep.subr.mxu0 0.0
    %988 = vmatpush1.msra.mxu0 %v955
    %989 = vmatprep.subr.mxu0 0.0
    %990 = vmatpush1.msra.mxu0 %v954
    %991 = vmatprep.subr.mxu0 0.0
    %992 = vmatpush1.msra.mxu0 %v953
    %993 = vmatprep.subr.mxu0 0.0
    %994 = vmatpush1.msra.mxu0 %v952
    %995 = vmatprep.subr.mxu0 0.0
    %996 = vmatpush1.msra.mxu0 %v951
    %997 = vmatprep.subr.mxu0 0.0
    %998 = vmatpush1.msra.mxu0 %v950
    %999 = vmatprep.subr.mxu0 0.0
    %1000 = vmatpush1.msra.mxu0 %v949
    %1001 = vmatprep.subr.mxu0 0.0
    %1002 = vmatpush1.msra.mxu0 %v948
    %1003 = vmatprep.subr.mxu0 0.0
    %1004 = vmatpush1.msra.mxu0 %v947
    %1005 = vmatprep.subr.mxu0 0.0
    %1006 = vmatpush1.msra.mxu0 %v946
    %1007 = vmatprep.subr.mxu0 0.0
    %1008 = vmatpush1.msra.mxu0 %v945
    %1009 = vmatprep.subr.mxu0 0.0
    %1010 = vmatpush2.msra.mxu0 %v976
    %1011 = vmatprep.subr.mxu0 0.0
    %1012 = vmatpush2.msra.mxu0 %v975
    %1013 = vmatprep.subr.mxu0 0.0
    %1014 = vmatpush2.msra.mxu0 %v974
    %1015 = vmatprep.subr.mxu0 0.0
    %1016 = vmatpush2.msra.mxu0 %v973
    %1017 = vmatprep.subr.mxu0 0.0
    %1018 = vmatpush2.msra.mxu0 %v972
    %1019 = vmatprep.subr.mxu0 0.0
    %1020 = vmatpush2.msra.mxu0 %v971
    %1021 = vmatprep.subr.mxu0 0.0
    %1022 = vmatpush2.msra.mxu0 %v970
    %1023 = vmatprep.subr.mxu0 0.0
    %1024 = vmatpush2.msra.mxu0 %v969
    %1025 = vmatprep.subr.mxu0 0.0
    %1026 = vmatpush2.msra.mxu0 %v968
    %1027 = vmatprep.subr.mxu0 0.0
    %1028 = vmatpush2.msra.mxu0 %v967
    %1029 = vmatprep.subr.mxu0 0.0
    %1030 = vmatpush2.msra.mxu0 %v966
    %1031 = vmatprep.subr.mxu0 0.0
    %1032 = vmatpush2.msra.mxu0 %v965
    %1033 = vmatprep.subr.mxu0 0.0
    %1034 = vmatpush2.msra.mxu0 %v964
    %1035 = vmatprep.subr.mxu0 0.0
    %1036 = vmatpush2.msra.mxu0 %v963
    %1037 = vmatprep.subr.mxu0 0.0
    %1038 = vmatpush2.msra.mxu0 %v962
    %1039 = vmatprep.subr.mxu0 0.0
    %1040 = vmatpush2.msra.mxu0 %v961
    %1041 = vmatprep.mubr.f32.mxu0 %v943
    %1042 = vmatmul.mubr.f32.gmra.mxu0 %v942
    %v1043 = vpop.f32.mrf.mxu0
    %v1044 = vadd.f32 0.0, %v1043
    %v1045 = vpop.f32.mrf.mxu0
    %1046 = vdwg.mxu0
    %v1047 = vadd.f32 %v944, %v1044
    %s1048 = scalar_lea.vmem %s2, 256
    %v1049 = vld [vmem:[%s1048] sm:$0xff]
    %v1050 = vld [vmem:[%s1048 + $0x8] sm:$0xff]
    %v1051 = vld [vmem:[%s1048 + $0x10] sm:$0xff]
    %v1052 = vld [vmem:[%s1048 + $0x18] sm:$0xff]
    %v1053 = vld [vmem:[%s1048 + $0x20] sm:$0xff]
    %v1054 = vld [vmem:[%s1048 + $0x28] sm:$0xff]
    %v1055 = vld [vmem:[%s1048 + $0x30] sm:$0xff]
    %v1056 = vld [vmem:[%s1048 + $0x38] sm:$0xff]
    %v1057 = vld [vmem:[%s1048 + $0x40] sm:$0xff]
    %v1058 = vld [vmem:[%s1048 + $0x48] sm:$0xff]
    %v1059 = vld [vmem:[%s1048 + $0x50] sm:$0xff]
    %v1060 = vld [vmem:[%s1048 + $0x58] sm:$0xff]
    %v1061 = vld [vmem:[%s1048 + $0x60] sm:$0xff]
    %v1062 = vld [vmem:[%s1048 + $0x68] sm:$0xff]
    %v1063 = vld [vmem:[%s1048 + $0x70] sm:$0xff]
    %v1064 = vld [vmem:[%s1048 + $0x78] sm:$0xff]
    %v1065 = vld [vmem:[%s1048 + $0x80] sm:$0xff]
    %v1066 = vld [vmem:[%s1048 + $0x88] sm:$0xff]
    %v1067 = vld [vmem:[%s1048 + $0x90] sm:$0xff]
    %v1068 = vld [vmem:[%s1048 + $0x98] sm:$0xff]
    %v1069 = vld [vmem:[%s1048 + $0xa0] sm:$0xff]
    %v1070 = vld [vmem:[%s1048 + $0xa8] sm:$0xff]
    %v1071 = vld [vmem:[%s1048 + $0xb0] sm:$0xff]
    %v1072 = vld [vmem:[%s1048 + $0xb8] sm:$0xff]
    %v1073 = vld [vmem:[%s1048 + $0xc0] sm:$0xff]
    %v1074 = vld [vmem:[%s1048 + $0xc8] sm:$0xff]
    %v1075 = vld [vmem:[%s1048 + $0xd0] sm:$0xff]
    %v1076 = vld [vmem:[%s1048 + $0xd8] sm:$0xff]
    %v1077 = vld [vmem:[%s1048 + $0xe0] sm:$0xff]
    %v1078 = vld [vmem:[%s1048 + $0xe8] sm:$0xff]
    %v1079 = vld [vmem:[%s1048 + $0xf0] sm:$0xff]
    %v1080 = vld [vmem:[%s1048 + $0xf8] sm:$0xff]
    %v1083 = vrot.slane %v942, 1
    %v1084 = vrot.slane %v943, 1
    %1087 = vmatprep.subr.mxu0 0.0
    %1088 = vmatpush1.msra.mxu0 %v1064
    %1089 = vmatprep.subr.mxu0 0.0
    %1090 = vmatpush1.msra.mxu0 %v1063
    %1091 = vmatprep.subr.mxu0 0.0
    %1092 = vmatpush1.msra.mxu0 %v1062
    %1093 = vmatprep.subr.mxu0 0.0
    %1094 = vmatpush1.msra.mxu0 %v1061
    %1095 = vmatprep.subr.mxu0 0.0
    %1096 = vmatpush1.msra.mxu0 %v1060
    %1097 = vmatprep.subr.mxu0 0.0
    %1098 = vmatpush1.msra.mxu0 %v1059
    %1099 = vmatprep.subr.mxu0 0.0
    %1100 = vmatpush1.msra.mxu0 %v1058
    %1101 = vmatprep.subr.mxu0 0.0
    %1102 = vmatpush1.msra.mxu0 %v1057
    %1103 = vmatprep.subr.mxu0 0.0
    %1104 = vmatpush1.msra.mxu0 %v1056
    %1105 = vmatprep.subr.mxu0 0.0
    %1106 = vmatpush1.msra.mxu0 %v1055
    %1107 = vmatprep.subr.mxu0 0.0
    %1108 = vmatpush1.msra.mxu0 %v1054
    %1109 = vmatprep.subr.mxu0 0.0
    %1110 = vmatpush1.msra.mxu0 %v1053
    %1111 = vmatprep.subr.mxu0 0.0
    %1112 = vmatpush1.msra.mxu0 %v1052
    %1113 = vmatprep.subr.mxu0 0.0
    %1114 = vmatpush1.msra.mxu0 %v1051
    %1115 = vmatprep.subr.mxu0 0.0
    %1116 = vmatpush1.msra.mxu0 %v1050
    %1117 = vmatprep.subr.mxu0 0.0
    %1118 = vmatpush1.msra.mxu0 %v1049
    %1119 = vmatprep.subr.mxu0 0.0
    %1120 = vmatpush2.msra.mxu0 %v1080
    %1121 = vmatprep.subr.mxu0 0.0
    %1122 = vmatpush2.msra.mxu0 %v1079
    %1123 = vmatprep.subr.mxu0 0.0
    %1124 = vmatpush2.msra.mxu0 %v1078
    %1125 = vmatprep.subr.mxu0 0.0
    %1126 = vmatpush2.msra.mxu0 %v1077
    %1127 = vmatprep.subr.mxu0 0.0
    %1128 = vmatpush2.msra.mxu0 %v1076
    %1129 = vmatprep.subr.mxu0 0.0
    %1130 = vmatpush2.msra.mxu0 %v1075
    %1131 = vmatprep.subr.mxu0 0.0
    %1132 = vmatpush2.msra.mxu0 %v1074
    %1133 = vmatprep.subr.mxu0 0.0
    %1134 = vmatpush2.msra.mxu0 %v1073
    %1135 = vmatprep.subr.mxu0 0.0
    %1136 = vmatpush2.msra.mxu0 %v1072
    %1137 = vmatprep.subr.mxu0 0.0
    %1138 = vmatpush2.msra.mxu0 %v1071
    %1139 = vmatprep.subr.mxu0 0.0
    %1140 = vmatpush2.msra.mxu0 %v1070
    %1141 = vmatprep.subr.mxu0 0.0
    %1142 = vmatpush2.msra.mxu0 %v1069
    %1143 = vmatprep.subr.mxu0 0.0
    %1144 = vmatpush2.msra.mxu0 %v1068
    %1145 = vmatprep.subr.mxu0 0.0
    %1146 = vmatpush2.msra.mxu0 %v1067
    %1147 = vmatprep.subr.mxu0 0.0
    %1148 = vmatpush2.msra.mxu0 %v1066
    %1149 = vmatprep.subr.mxu0 0.0
    %1150 = vmatpush2.msra.mxu0 %v1065
    %1151 = vmatprep.mubr.f32.mxu0 %v1084
    %1152 = vmatmul.mubr.f32.gmra.mxu0 %v1083
    %v1153 = vpop.f32.mrf.mxu0
    %v1154 = vadd.f32 0.0, %v1153
    %v1155 = vpop.f32.mrf.mxu0
    %1156 = vdwg.mxu0
    %v1157 = vadd.f32 %v1047, %v1154
    %s1158 = scalar_lea.vmem %s2, 512
    %v1159 = vld [vmem:[%s1158] sm:$0xff]
    %v1160 = vld [vmem:[%s1158 + $0x8] sm:$0xff]
    %v1161 = vld [vmem:[%s1158 + $0x10] sm:$0xff]
    %v1162 = vld [vmem:[%s1158 + $0x18] sm:$0xff]
    %v1163 = vld [vmem:[%s1158 + $0x20] sm:$0xff]
    %v1164 = vld [vmem:[%s1158 + $0x28] sm:$0xff]
    %v1165 = vld [vmem:[%s1158 + $0x30] sm:$0xff]
    %v1166 = vld [vmem:[%s1158 + $0x38] sm:$0xff]
    %v1167 = vld [vmem:[%s1158 + $0x40] sm:$0xff]
    %v1168 = vld [vmem:[%s1158 + $0x48] sm:$0xff]
    %v1169 = vld [vmem:[%s1158 + $0x50] sm:$0xff]
    %v1170 = vld [vmem:[%s1158 + $0x58] sm:$0xff]
    %v1171 = vld [vmem:[%s1158 + $0x60] sm:$0xff]
    %v1172 = vld [vmem:[%s1158 + $0x68] sm:$0xff]
    %v1173 = vld [vmem:[%s1158 + $0x70] sm:$0xff]
    %v1174 = vld [vmem:[%s1158 + $0x78] sm:$0xff]
    %v1175 = vld [vmem:[%s1158 + $0x80] sm:$0xff]
    %v1176 = vld [vmem:[%s1158 + $0x88] sm:$0xff]
    %v1177 = vld [vmem:[%s1158 + $0x90] sm:$0xff]
    %v1178 = vld [vmem:[%s1158 + $0x98] sm:$0xff]
    %v1179 = vld [vmem:[%s1158 + $0xa0] sm:$0xff]
    %v1180 = vld [vmem:[%s1158 + $0xa8] sm:$0xff]
    %v1181 = vld [vmem:[%s1158 + $0xb0] sm:$0xff]
    %v1182 = vld [vmem:[%s1158 + $0xb8] sm:$0xff]
    %v1183 = vld [vmem:[%s1158 + $0xc0] sm:$0xff]
    %v1184 = vld [vmem:[%s1158 + $0xc8] sm:$0xff]
    %v1185 = vld [vmem:[%s1158 + $0xd0] sm:$0xff]
    %v1186 = vld [vmem:[%s1158 + $0xd8] sm:$0xff]
    %v1187 = vld [vmem:[%s1158 + $0xe0] sm:$0xff]
    %v1188 = vld [vmem:[%s1158 + $0xe8] sm:$0xff]
    %v1189 = vld [vmem:[%s1158 + $0xf0] sm:$0xff]
    %v1190 = vld [vmem:[%s1158 + $0xf8] sm:$0xff]
    %v1191 = vrot.slane %v942, 2
    %v1192 = vrot.slane %v943, 2
    %1195 = vmatprep.subr.mxu0 0.0
    %1196 = vmatpush1.msra.mxu0 %v1174
    %1197 = vmatprep.subr.mxu0 0.0
    %1198 = vmatpush1.msra.mxu0 %v1173
    %1199 = vmatprep.subr.mxu0 0.0
    %1200 = vmatpush1.msra.mxu0 %v1172
    %1201 = vmatprep.subr.mxu0 0.0
    %1202 = vmatpush1.msra.mxu0 %v1171
    %1203 = vmatprep.subr.mxu0 0.0
    %1204 = vmatpush1.msra.mxu0 %v1170
    %1205 = vmatprep.subr.mxu0 0.0
    %1206 = vmatpush1.msra.mxu0 %v1169
    %1207 = vmatprep.subr.mxu0 0.0
    %1208 = vmatpush1.msra.mxu0 %v1168
    %1209 = vmatprep.subr.mxu0 0.0
    %1210 = vmatpush1.msra.mxu0 %v1167
    %1211 = vmatprep.subr.mxu0 0.0
    %1212 = vmatpush1.msra.mxu0 %v1166
    %1213 = vmatprep.subr.mxu0 0.0
    %1214 = vmatpush1.msra.mxu0 %v1165
    %1215 = vmatprep.subr.mxu0 0.0
    %1216 = vmatpush1.msra.mxu0 %v1164
    %1217 = vmatprep.subr.mxu0 0.0
    %1218 = vmatpush1.msra.mxu0 %v1163
    %1219 = vmatprep.subr.mxu0 0.0
    %1220 = vmatpush1.msra.mxu0 %v1162
    %1221 = vmatprep.subr.mxu0 0.0
    %1222 = vmatpush1.msra.mxu0 %v1161
    %1223 = vmatprep.subr.mxu0 0.0
    %1224 = vmatpush1.msra.mxu0 %v1160
    %1225 = vmatprep.subr.mxu0 0.0
    %1226 = vmatpush1.msra.mxu0 %v1159
    %1227 = vmatprep.subr.mxu0 0.0
    %1228 = vmatpush2.msra.mxu0 %v1190
    %1229 = vmatprep.subr.mxu0 0.0
    %1230 = vmatpush2.msra.mxu0 %v1189
    %1231 = vmatprep.subr.mxu0 0.0
    %1232 = vmatpush2.msra.mxu0 %v1188
    %1233 = vmatprep.subr.mxu0 0.0
    %1234 = vmatpush2.msra.mxu0 %v1187
    %1235 = vmatprep.subr.mxu0 0.0
    %1236 = vmatpush2.msra.mxu0 %v1186
    %1237 = vmatprep.subr.mxu0 0.0
    %1238 = vmatpush2.msra.mxu0 %v1185
    %1239 = vmatprep.subr.mxu0 0.0
    %1240 = vmatpush2.msra.mxu0 %v1184
    %1241 = vmatprep.subr.mxu0 0.0
    %1242 = vmatpush2.msra.mxu0 %v1183
    %1243 = vmatprep.subr.mxu0 0.0
    %1244 = vmatpush2.msra.mxu0 %v1182
    %1245 = vmatprep.subr.mxu0 0.0
    %1246 = vmatpush2.msra.mxu0 %v1181
    %1247 = vmatprep.subr.mxu0 0.0
    %1248 = vmatpush2.msra.mxu0 %v1180
    %1249 = vmatprep.subr.mxu0 0.0
    %1250 = vmatpush2.msra.mxu0 %v1179
    %1251 = vmatprep.subr.mxu0 0.0
    %1252 = vmatpush2.msra.mxu0 %v1178
    %1253 = vmatprep.subr.mxu0 0.0
    %1254 = vmatpush2.msra.mxu0 %v1177
    %1255 = vmatprep.subr.mxu0 0.0
    %1256 = vmatpush2.msra.mxu0 %v1176
    %1257 = vmatprep.subr.mxu0 0.0
    %1258 = vmatpush2.msra.mxu0 %v1175
    %1259 = vmatprep.mubr.f32.mxu0 %v1192
    %1260 = vmatmul.mubr.f32.gmra.mxu0 %v1191
    %v1261 = vpop.f32.mrf.mxu0
    %v1262 = vadd.f32 0.0, %v1261
    %v1263 = vpop.f32.mrf.mxu0
    %1264 = vdwg.mxu0
    %v1265 = vadd.f32 %v1157, %v1262
    %s1266 = scalar_lea.vmem %s2, 768
    %v1267 = vld [vmem:[%s1266] sm:$0xff]
    %v1268 = vld [vmem:[%s1266 + $0x8] sm:$0xff]
    %v1269 = vld [vmem:[%s1266 + $0x10] sm:$0xff]
    %v1270 = vld [vmem:[%s1266 + $0x18] sm:$0xff]
    %v1271 = vld [vmem:[%s1266 + $0x20] sm:$0xff]
    %v1272 = vld [vmem:[%s1266 + $0x28] sm:$0xff]
    %v1273 = vld [vmem:[%s1266 + $0x30] sm:$0xff]
    %v1274 = vld [vmem:[%s1266 + $0x38] sm:$0xff]
    %v1275 = vld [vmem:[%s1266 + $0x40] sm:$0xff]
    %v1276 = vld [vmem:[%s1266 + $0x48] sm:$0xff]
    %v1277 = vld [vmem:[%s1266 + $0x50] sm:$0xff]
    %v1278 = vld [vmem:[%s1266 + $0x58] sm:$0xff]
    %v1279 = vld [vmem:[%s1266 + $0x60] sm:$0xff]
    %v1280 = vld [vmem:[%s1266 + $0x68] sm:$0xff]
    %v1281 = vld [vmem:[%s1266 + $0x70] sm:$0xff]
    %v1282 = vld [vmem:[%s1266 + $0x78] sm:$0xff]
    %v1283 = vld [vmem:[%s1266 + $0x80] sm:$0xff]
    %v1284 = vld [vmem:[%s1266 + $0x88] sm:$0xff]
    %v1285 = vld [vmem:[%s1266 + $0x90] sm:$0xff]
    %v1286 = vld [vmem:[%s1266 + $0x98] sm:$0xff]
    %v1287 = vld [vmem:[%s1266 + $0xa0] sm:$0xff]
    %v1288 = vld [vmem:[%s1266 + $0xa8] sm:$0xff]
    %v1289 = vld [vmem:[%s1266 + $0xb0] sm:$0xff]
    %v1290 = vld [vmem:[%s1266 + $0xb8] sm:$0xff]
    %v1291 = vld [vmem:[%s1266 + $0xc0] sm:$0xff]
    %v1292 = vld [vmem:[%s1266 + $0xc8] sm:$0xff]
    %v1293 = vld [vmem:[%s1266 + $0xd0] sm:$0xff]
    %v1294 = vld [vmem:[%s1266 + $0xd8] sm:$0xff]
    %v1295 = vld [vmem:[%s1266 + $0xe0] sm:$0xff]
    %v1296 = vld [vmem:[%s1266 + $0xe8] sm:$0xff]
    %v1297 = vld [vmem:[%s1266 + $0xf0] sm:$0xff]
    %v1298 = vld [vmem:[%s1266 + $0xf8] sm:$0xff]
    %v1299 = vrot.slane %v942, 3
    %v1300 = vrot.slane %v943, 3
    %1303 = vmatprep.subr.mxu0 0.0
    %1304 = vmatpush1.msra.mxu0 %v1282
    %1305 = vmatprep.subr.mxu0 0.0
    %1306 = vmatpush1.msra.mxu0 %v1281
    %1307 = vmatprep.subr.mxu0 0.0
    %1308 = vmatpush1.msra.mxu0 %v1280
    %1309 = vmatprep.subr.mxu0 0.0
    %1310 = vmatpush1.msra.mxu0 %v1279
    %1311 = vmatprep.subr.mxu0 0.0
    %1312 = vmatpush1.msra.mxu0 %v1278
    %1313 = vmatprep.subr.mxu0 0.0
    %1314 = vmatpush1.msra.mxu0 %v1277
    %1315 = vmatprep.subr.mxu0 0.0
    %1316 = vmatpush1.msra.mxu0 %v1276
    %1317 = vmatprep.subr.mxu0 0.0
    %1318 = vmatpush1.msra.mxu0 %v1275
    %1319 = vmatprep.subr.mxu0 0.0
    %1320 = vmatpush1.msra.mxu0 %v1274
    %1321 = vmatprep.subr.mxu0 0.0
    %1322 = vmatpush1.msra.mxu0 %v1273
    %1323 = vmatprep.subr.mxu0 0.0
    %1324 = vmatpush1.msra.mxu0 %v1272
    %1325 = vmatprep.subr.mxu0 0.0
    %1326 = vmatpush1.msra.mxu0 %v1271
    %1327 = vmatprep.subr.mxu0 0.0
    %1328 = vmatpush1.msra.mxu0 %v1270
    %1329 = vmatprep.subr.mxu0 0.0
    %1330 = vmatpush1.msra.mxu0 %v1269
    %1331 = vmatprep.subr.mxu0 0.0
    %1332 = vmatpush1.msra.mxu0 %v1268
    %1333 = vmatprep.subr.mxu0 0.0
    %1334 = vmatpush1.msra.mxu0 %v1267
    %1335 = vmatprep.subr.mxu0 0.0
    %1336 = vmatpush2.msra.mxu0 %v1298
    %1337 = vmatprep.subr.mxu0 0.0
    %1338 = vmatpush2.msra.mxu0 %v1297
    %1339 = vmatprep.subr.mxu0 0.0
    %1340 = vmatpush2.msra.mxu0 %v1296
    %1341 = vmatprep.subr.mxu0 0.0
    %1342 = vmatpush2.msra.mxu0 %v1295
    %1343 = vmatprep.subr.mxu0 0.0
    %1344 = vmatpush2.msra.mxu0 %v1294
    %1345 = vmatprep.subr.mxu0 0.0
    %1346 = vmatpush2.msra.mxu0 %v1293
    %1347 = vmatprep.subr.mxu0 0.0
    %1348 = vmatpush2.msra.mxu0 %v1292
    %1349 = vmatprep.subr.mxu0 0.0
    %1350 = vmatpush2.msra.mxu0 %v1291
    %1351 = vmatprep.subr.mxu0 0.0
    %1352 = vmatpush2.msra.mxu0 %v1290
    %1353 = vmatprep.subr.mxu0 0.0
    %1354 = vmatpush2.msra.mxu0 %v1289
    %1355 = vmatprep.subr.mxu0 0.0
    %1356 = vmatpush2.msra.mxu0 %v1288
    %1357 = vmatprep.subr.mxu0 0.0
    %1358 = vmatpush2.msra.mxu0 %v1287
    %1359 = vmatprep.subr.mxu0 0.0
    %1360 = vmatpush2.msra.mxu0 %v1286
    %1361 = vmatprep.subr.mxu0 0.0
    %1362 = vmatpush2.msra.mxu0 %v1285
    %1363 = vmatprep.subr.mxu0 0.0
    %1364 = vmatpush2.msra.mxu0 %v1284
    %1365 = vmatprep.subr.mxu0 0.0
    %1366 = vmatpush2.msra.mxu0 %v1283
    %1367 = vmatprep.mubr.f32.mxu0 %v1300
    %1368 = vmatmul.mubr.f32.gmra.mxu0 %v1299
    %v1369 = vpop.f32.mrf.mxu0
    %v1370 = vadd.f32 0.0, %v1369
    %v1371 = vpop.f32.mrf.mxu0
    %1372 = vdwg.mxu0
    %v1373 = vadd.f32 %v1265, %v1370
    %s1374 = scalar_lea.vmem %s2, 1024
    %v1375 = vld [vmem:[%s1374] sm:$0xff]
    %v1376 = vld [vmem:[%s1374 + $0x8] sm:$0xff]
    %v1377 = vld [vmem:[%s1374 + $0x10] sm:$0xff]
    %v1378 = vld [vmem:[%s1374 + $0x18] sm:$0xff]
    %v1379 = vld [vmem:[%s1374 + $0x20] sm:$0xff]
    %v1380 = vld [vmem:[%s1374 + $0x28] sm:$0xff]
    %v1381 = vld [vmem:[%s1374 + $0x30] sm:$0xff]
    %v1382 = vld [vmem:[%s1374 + $0x38] sm:$0xff]
    %v1383 = vld [vmem:[%s1374 + $0x40] sm:$0xff]
    %v1384 = vld [vmem:[%s1374 + $0x48] sm:$0xff]
    %v1385 = vld [vmem:[%s1374 + $0x50] sm:$0xff]
    %v1386 = vld [vmem:[%s1374 + $0x58] sm:$0xff]
    %v1387 = vld [vmem:[%s1374 + $0x60] sm:$0xff]
    %v1388 = vld [vmem:[%s1374 + $0x68] sm:$0xff]
    %v1389 = vld [vmem:[%s1374 + $0x70] sm:$0xff]
    %v1390 = vld [vmem:[%s1374 + $0x78] sm:$0xff]
    %v1391 = vld [vmem:[%s1374 + $0x80] sm:$0xff]
    %v1392 = vld [vmem:[%s1374 + $0x88] sm:$0xff]
    %v1393 = vld [vmem:[%s1374 + $0x90] sm:$0xff]
    %v1394 = vld [vmem:[%s1374 + $0x98] sm:$0xff]
    %v1395 = vld [vmem:[%s1374 + $0xa0] sm:$0xff]
    %v1396 = vld [vmem:[%s1374 + $0xa8] sm:$0xff]
    %v1397 = vld [vmem:[%s1374 + $0xb0] sm:$0xff]
    %v1398 = vld [vmem:[%s1374 + $0xb8] sm:$0xff]
    %v1399 = vld [vmem:[%s1374 + $0xc0] sm:$0xff]
    %v1400 = vld [vmem:[%s1374 + $0xc8] sm:$0xff]
    %v1401 = vld [vmem:[%s1374 + $0xd0] sm:$0xff]
    %v1402 = vld [vmem:[%s1374 + $0xd8] sm:$0xff]
    %v1403 = vld [vmem:[%s1374 + $0xe0] sm:$0xff]
    %v1404 = vld [vmem:[%s1374 + $0xe8] sm:$0xff]
    %v1405 = vld [vmem:[%s1374 + $0xf0] sm:$0xff]
    %v1406 = vld [vmem:[%s1374 + $0xf8] sm:$0xff]
    %v1407 = vrot.slane %v942, 4
    %v1408 = vrot.slane %v943, 4
    %1411 = vmatprep.subr.mxu0 0.0
    %1412 = vmatpush1.msra.mxu0 %v1390
    %1413 = vmatprep.subr.mxu0 0.0
    %1414 = vmatpush1.msra.mxu0 %v1389
    %1415 = vmatprep.subr.mxu0 0.0
    %1416 = vmatpush1.msra.mxu0 %v1388
    %1417 = vmatprep.subr.mxu0 0.0
    %1418 = vmatpush1.msra.mxu0 %v1387
    %1419 = vmatprep.subr.mxu0 0.0
    %1420 = vmatpush1.msra.mxu0 %v1386
    %1421 = vmatprep.subr.mxu0 0.0
    %1422 = vmatpush1.msra.mxu0 %v1385
    %1423 = vmatprep.subr.mxu0 0.0
    %1424 = vmatpush1.msra.mxu0 %v1384
    %1425 = vmatprep.subr.mxu0 0.0
    %1426 = vmatpush1.msra.mxu0 %v1383
    %1427 = vmatprep.subr.mxu0 0.0
    %1428 = vmatpush1.msra.mxu0 %v1382
    %1429 = vmatprep.subr.mxu0 0.0
    %1430 = vmatpush1.msra.mxu0 %v1381
    %1431 = vmatprep.subr.mxu0 0.0
    %1432 = vmatpush1.msra.mxu0 %v1380
    %1433 = vmatprep.subr.mxu0 0.0
    %1434 = vmatpush1.msra.mxu0 %v1379
    %1435 = vmatprep.subr.mxu0 0.0
    %1436 = vmatpush1.msra.mxu0 %v1378
    %1437 = vmatprep.subr.mxu0 0.0
    %1438 = vmatpush1.msra.mxu0 %v1377
    %1439 = vmatprep.subr.mxu0 0.0
    %1440 = vmatpush1.msra.mxu0 %v1376
    %1441 = vmatprep.subr.mxu0 0.0
    %1442 = vmatpush1.msra.mxu0 %v1375
    %1443 = vmatprep.subr.mxu0 0.0
    %1444 = vmatpush2.msra.mxu0 %v1406
    %1445 = vmatprep.subr.mxu0 0.0
    %1446 = vmatpush2.msra.mxu0 %v1405
    %1447 = vmatprep.subr.mxu0 0.0
    %1448 = vmatpush2.msra.mxu0 %v1404
    %1449 = vmatprep.subr.mxu0 0.0
    %1450 = vmatpush2.msra.mxu0 %v1403
    %1451 = vmatprep.subr.mxu0 0.0
    %1452 = vmatpush2.msra.mxu0 %v1402
    %1453 = vmatprep.subr.mxu0 0.0
    %1454 = vmatpush2.msra.mxu0 %v1401
    %1455 = vmatprep.subr.mxu0 0.0
    %1456 = vmatpush2.msra.mxu0 %v1400
    %1457 = vmatprep.subr.mxu0 0.0
    %1458 = vmatpush2.msra.mxu0 %v1399
    %1459 = vmatprep.subr.mxu0 0.0
    %1460 = vmatpush2.msra.mxu0 %v1398
    %1461 = vmatprep.subr.mxu0 0.0
    %1462 = vmatpush2.msra.mxu0 %v1397
    %1463 = vmatprep.subr.mxu0 0.0
    %1464 = vmatpush2.msra.mxu0 %v1396
    %1465 = vmatprep.subr.mxu0 0.0
    %1466 = vmatpush2.msra.mxu0 %v1395
    %1467 = vmatprep.subr.mxu0 0.0
    %1468 = vmatpush2.msra.mxu0 %v1394
    %1469 = vmatprep.subr.mxu0 0.0
    %1470 = vmatpush2.msra.mxu0 %v1393
    %1471 = vmatprep.subr.mxu0 0.0
    %1472 = vmatpush2.msra.mxu0 %v1392
    %1473 = vmatprep.subr.mxu0 0.0
    %1474 = vmatpush2.msra.mxu0 %v1391
    %1475 = vmatprep.mubr.f32.mxu0 %v1408
    %1476 = vmatmul.mubr.f32.gmra.mxu0 %v1407
    %v1477 = vpop.f32.mrf.mxu0
    %v1478 = vadd.f32 0.0, %v1477
    %v1479 = vpop.f32.mrf.mxu0
    %1480 = vdwg.mxu0
    %v1481 = vadd.f32 %v1373, %v1478
    %s1482 = scalar_lea.vmem %s2, 1280
    %v1483 = vld [vmem:[%s1482] sm:$0xff]
    %v1484 = vld [vmem:[%s1482 + $0x8] sm:$0xff]
    %v1485 = vld [vmem:[%s1482 + $0x10] sm:$0xff]
    %v1486 = vld [vmem:[%s1482 + $0x18] sm:$0xff]
    %v1487 = vld [vmem:[%s1482 + $0x20] sm:$0xff]
    %v1488 = vld [vmem:[%s1482 + $0x28] sm:$0xff]
    %v1489 = vld [vmem:[%s1482 + $0x30] sm:$0xff]
    %v1490 = vld [vmem:[%s1482 + $0x38] sm:$0xff]
    %v1491 = vld [vmem:[%s1482 + $0x40] sm:$0xff]
    %v1492 = vld [vmem:[%s1482 + $0x48] sm:$0xff]
    %v1493 = vld [vmem:[%s1482 + $0x50] sm:$0xff]
    %v1494 = vld [vmem:[%s1482 + $0x58] sm:$0xff]
    %v1495 = vld [vmem:[%s1482 + $0x60] sm:$0xff]
    %v1496 = vld [vmem:[%s1482 + $0x68] sm:$0xff]
    %v1497 = vld [vmem:[%s1482 + $0x70] sm:$0xff]
    %v1498 = vld [vmem:[%s1482 + $0x78] sm:$0xff]
    %v1499 = vld [vmem:[%s1482 + $0x80] sm:$0xff]
    %v1500 = vld [vmem:[%s1482 + $0x88] sm:$0xff]
    %v1501 = vld [vmem:[%s1482 + $0x90] sm:$0xff]
    %v1502 = vld [vmem:[%s1482 + $0x98] sm:$0xff]
    %v1503 = vld [vmem:[%s1482 + $0xa0] sm:$0xff]
    %v1504 = vld [vmem:[%s1482 + $0xa8] sm:$0xff]
    %v1505 = vld [vmem:[%s1482 + $0xb0] sm:$0xff]
    %v1506 = vld [vmem:[%s1482 + $0xb8] sm:$0xff]
    %v1507 = vld [vmem:[%s1482 + $0xc0] sm:$0xff]
    %v1508 = vld [vmem:[%s1482 + $0xc8] sm:$0xff]
    %v1509 = vld [vmem:[%s1482 + $0xd0] sm:$0xff]
    %v1510 = vld [vmem:[%s1482 + $0xd8] sm:$0xff]
    %v1511 = vld [vmem:[%s1482 + $0xe0] sm:$0xff]
    %v1512 = vld [vmem:[%s1482 + $0xe8] sm:$0xff]
    %v1513 = vld [vmem:[%s1482 + $0xf0] sm:$0xff]
    %v1514 = vld [vmem:[%s1482 + $0xf8] sm:$0xff]
    %v1515 = vrot.slane %v942, 5
    %v1516 = vrot.slane %v943, 5
    %1519 = vmatprep.subr.mxu0 0.0
    %1520 = vmatpush1.msra.mxu0 %v1498
    %1521 = vmatprep.subr.mxu0 0.0
    %1522 = vmatpush1.msra.mxu0 %v1497
    %1523 = vmatprep.subr.mxu0 0.0
    %1524 = vmatpush1.msra.mxu0 %v1496
    %1525 = vmatprep.subr.mxu0 0.0
    %1526 = vmatpush1.msra.mxu0 %v1495
    %1527 = vmatprep.subr.mxu0 0.0
    %1528 = vmatpush1.msra.mxu0 %v1494
    %1529 = vmatprep.subr.mxu0 0.0
    %1530 = vmatpush1.msra.mxu0 %v1493
    %1531 = vmatprep.subr.mxu0 0.0
    %1532 = vmatpush1.msra.mxu0 %v1492
    %1533 = vmatprep.subr.mxu0 0.0
    %1534 = vmatpush1.msra.mxu0 %v1491
    %1535 = vmatprep.subr.mxu0 0.0
    %1536 = vmatpush1.msra.mxu0 %v1490
    %1537 = vmatprep.subr.mxu0 0.0
    %1538 = vmatpush1.msra.mxu0 %v1489
    %1539 = vmatprep.subr.mxu0 0.0
    %1540 = vmatpush1.msra.mxu0 %v1488
    %1541 = vmatprep.subr.mxu0 0.0
    %1542 = vmatpush1.msra.mxu0 %v1487
    %1543 = vmatprep.subr.mxu0 0.0
    %1544 = vmatpush1.msra.mxu0 %v1486
    %1545 = vmatprep.subr.mxu0 0.0
    %1546 = vmatpush1.msra.mxu0 %v1485
    %1547 = vmatprep.subr.mxu0 0.0
    %1548 = vmatpush1.msra.mxu0 %v1484
    %1549 = vmatprep.subr.mxu0 0.0
    %1550 = vmatpush1.msra.mxu0 %v1483
    %1551 = vmatprep.subr.mxu0 0.0
    %1552 = vmatpush2.msra.mxu0 %v1514
    %1553 = vmatprep.subr.mxu0 0.0
    %1554 = vmatpush2.msra.mxu0 %v1513
    %1555 = vmatprep.subr.mxu0 0.0
    %1556 = vmatpush2.msra.mxu0 %v1512
    %1557 = vmatprep.subr.mxu0 0.0
    %1558 = vmatpush2.msra.mxu0 %v1511
    %1559 = vmatprep.subr.mxu0 0.0
    %1560 = vmatpush2.msra.mxu0 %v1510
    %1561 = vmatprep.subr.mxu0 0.0
    %1562 = vmatpush2.msra.mxu0 %v1509
    %1563 = vmatprep.subr.mxu0 0.0
    %1564 = vmatpush2.msra.mxu0 %v1508
    %1565 = vmatprep.subr.mxu0 0.0
    %1566 = vmatpush2.msra.mxu0 %v1507
    %1567 = vmatprep.subr.mxu0 0.0
    %1568 = vmatpush2.msra.mxu0 %v1506
    %1569 = vmatprep.subr.mxu0 0.0
    %1570 = vmatpush2.msra.mxu0 %v1505
    %1571 = vmatprep.subr.mxu0 0.0
    %1572 = vmatpush2.msra.mxu0 %v1504
    %1573 = vmatprep.subr.mxu0 0.0
    %1574 = vmatpush2.msra.mxu0 %v1503
    %1575 = vmatprep.subr.mxu0 0.0
    %1576 = vmatpush2.msra.mxu0 %v1502
    %1577 = vmatprep.subr.mxu0 0.0
    %1578 = vmatpush2.msra.mxu0 %v1501
    %1579 = vmatprep.subr.mxu0 0.0
    %1580 = vmatpush2.msra.mxu0 %v1500
    %1581 = vmatprep.subr.mxu0 0.0
    %1582 = vmatpush2.msra.mxu0 %v1499
    %1583 = vmatprep.mubr.f32.mxu0 %v1516
    %1584 = vmatmul.mubr.f32.gmra.mxu0 %v1515
    %v1585 = vpop.f32.mrf.mxu0
    %v1586 = vadd.f32 0.0, %v1585
    %v1587 = vpop.f32.mrf.mxu0
    %1588 = vdwg.mxu0
    %v1589 = vadd.f32 %v1481, %v1586
    %s1590 = scalar_lea.vmem %s2, 1536
    %v1591 = vld [vmem:[%s1590] sm:$0xff]
    %v1592 = vld [vmem:[%s1590 + $0x8] sm:$0xff]
    %v1593 = vld [vmem:[%s1590 + $0x10] sm:$0xff]
    %v1594 = vld [vmem:[%s1590 + $0x18] sm:$0xff]
    %v1595 = vld [vmem:[%s1590 + $0x20] sm:$0xff]
    %v1596 = vld [vmem:[%s1590 + $0x28] sm:$0xff]
    %v1597 = vld [vmem:[%s1590 + $0x30] sm:$0xff]
    %v1598 = vld [vmem:[%s1590 + $0x38] sm:$0xff]
    %v1599 = vld [vmem:[%s1590 + $0x40] sm:$0xff]
    %v1600 = vld [vmem:[%s1590 + $0x48] sm:$0xff]
    %v1601 = vld [vmem:[%s1590 + $0x50] sm:$0xff]
    %v1602 = vld [vmem:[%s1590 + $0x58] sm:$0xff]
    %v1603 = vld [vmem:[%s1590 + $0x60] sm:$0xff]
    %v1604 = vld [vmem:[%s1590 + $0x68] sm:$0xff]
    %v1605 = vld [vmem:[%s1590 + $0x70] sm:$0xff]
    %v1606 = vld [vmem:[%s1590 + $0x78] sm:$0xff]
    %v1607 = vld [vmem:[%s1590 + $0x80] sm:$0xff]
    %v1608 = vld [vmem:[%s1590 + $0x88] sm:$0xff]
    %v1609 = vld [vmem:[%s1590 + $0x90] sm:$0xff]
    %v1610 = vld [vmem:[%s1590 + $0x98] sm:$0xff]
    %v1611 = vld [vmem:[%s1590 + $0xa0] sm:$0xff]
    %v1612 = vld [vmem:[%s1590 + $0xa8] sm:$0xff]
    %v1613 = vld [vmem:[%s1590 + $0xb0] sm:$0xff]
    %v1614 = vld [vmem:[%s1590 + $0xb8] sm:$0xff]
    %v1615 = vld [vmem:[%s1590 + $0xc0] sm:$0xff]
    %v1616 = vld [vmem:[%s1590 + $0xc8] sm:$0xff]
    %v1617 = vld [vmem:[%s1590 + $0xd0] sm:$0xff]
    %v1618 = vld [vmem:[%s1590 + $0xd8] sm:$0xff]
    %v1619 = vld [vmem:[%s1590 + $0xe0] sm:$0xff]
    %v1620 = vld [vmem:[%s1590 + $0xe8] sm:$0xff]
    %v1621 = vld [vmem:[%s1590 + $0xf0] sm:$0xff]
    %v1622 = vld [vmem:[%s1590 + $0xf8] sm:$0xff]
    %v1623 = vrot.slane %v942, 6
    %v1624 = vrot.slane %v943, 6
    %1627 = vmatprep.subr.mxu0 0.0
    %1628 = vmatpush1.msra.mxu0 %v1606
    %1629 = vmatprep.subr.mxu0 0.0
    %1630 = vmatpush1.msra.mxu0 %v1605
    %1631 = vmatprep.subr.mxu0 0.0
    %1632 = vmatpush1.msra.mxu0 %v1604
    %1633 = vmatprep.subr.mxu0 0.0
    %1634 = vmatpush1.msra.mxu0 %v1603
    %1635 = vmatprep.subr.mxu0 0.0
    %1636 = vmatpush1.msra.mxu0 %v1602
    %1637 = vmatprep.subr.mxu0 0.0
    %1638 = vmatpush1.msra.mxu0 %v1601
    %1639 = vmatprep.subr.mxu0 0.0
    %1640 = vmatpush1.msra.mxu0 %v1600
    %1641 = vmatprep.subr.mxu0 0.0
    %1642 = vmatpush1.msra.mxu0 %v1599
    %1643 = vmatprep.subr.mxu0 0.0
    %1644 = vmatpush1.msra.mxu0 %v1598
    %1645 = vmatprep.subr.mxu0 0.0
    %1646 = vmatpush1.msra.mxu0 %v1597
    %1647 = vmatprep.subr.mxu0 0.0
    %1648 = vmatpush1.msra.mxu0 %v1596
    %1649 = vmatprep.subr.mxu0 0.0
    %1650 = vmatpush1.msra.mxu0 %v1595
    %1651 = vmatprep.subr.mxu0 0.0
    %1652 = vmatpush1.msra.mxu0 %v1594
    %1653 = vmatprep.subr.mxu0 0.0
    %1654 = vmatpush1.msra.mxu0 %v1593
    %1655 = vmatprep.subr.mxu0 0.0
    %1656 = vmatpush1.msra.mxu0 %v1592
    %1657 = vmatprep.subr.mxu0 0.0
    %1658 = vmatpush1.msra.mxu0 %v1591
    %1659 = vmatprep.subr.mxu0 0.0
    %1660 = vmatpush2.msra.mxu0 %v1622
    %1661 = vmatprep.subr.mxu0 0.0
    %1662 = vmatpush2.msra.mxu0 %v1621
    %1663 = vmatprep.subr.mxu0 0.0
    %1664 = vmatpush2.msra.mxu0 %v1620
    %1665 = vmatprep.subr.mxu0 0.0
    %1666 = vmatpush2.msra.mxu0 %v1619
    %1667 = vmatprep.subr.mxu0 0.0
    %1668 = vmatpush2.msra.mxu0 %v1618
    %1669 = vmatprep.subr.mxu0 0.0
    %1670 = vmatpush2.msra.mxu0 %v1617
    %1671 = vmatprep.subr.mxu0 0.0
    %1672 = vmatpush2.msra.mxu0 %v1616
    %1673 = vmatprep.subr.mxu0 0.0
    %1674 = vmatpush2.msra.mxu0 %v1615
    %1675 = vmatprep.subr.mxu0 0.0
    %1676 = vmatpush2.msra.mxu0 %v1614
    %1677 = vmatprep.subr.mxu0 0.0
    %1678 = vmatpush2.msra.mxu0 %v1613
    %1679 = vmatprep.subr.mxu0 0.0
    %1680 = vmatpush2.msra.mxu0 %v1612
    %1681 = vmatprep.subr.mxu0 0.0
    %1682 = vmatpush2.msra.mxu0 %v1611
    %1683 = vmatprep.subr.mxu0 0.0
    %1684 = vmatpush2.msra.mxu0 %v1610
    %1685 = vmatprep.subr.mxu0 0.0
    %1686 = vmatpush2.msra.mxu0 %v1609
    %1687 = vmatprep.subr.mxu0 0.0
    %1688 = vmatpush2.msra.mxu0 %v1608
    %1689 = vmatprep.subr.mxu0 0.0
    %1690 = vmatpush2.msra.mxu0 %v1607
    %1691 = vmatprep.mubr.f32.mxu0 %v1624
    %1692 = vmatmul.mubr.f32.gmra.mxu0 %v1623
    %v1693 = vpop.f32.mrf.mxu0
    %v1694 = vadd.f32 0.0, %v1693
    %v1695 = vpop.f32.mrf.mxu0
    %1696 = vdwg.mxu0
    %v1697 = vadd.f32 %v1589, %v1694
    %s1698 = scalar_lea.vmem %s2, 1792
    %v1699 = vld [vmem:[%s1698] sm:$0xff]
    %v1700 = vld [vmem:[%s1698 + $0x8] sm:$0xff]
    %v1701 = vld [vmem:[%s1698 + $0x10] sm:$0xff]
    %v1702 = vld [vmem:[%s1698 + $0x18] sm:$0xff]
    %v1703 = vld [vmem:[%s1698 + $0x20] sm:$0xff]
    %v1704 = vld [vmem:[%s1698 + $0x28] sm:$0xff]
    %v1705 = vld [vmem:[%s1698 + $0x30] sm:$0xff]
    %v1706 = vld [vmem:[%s1698 + $0x38] sm:$0xff]
    %v1707 = vld [vmem:[%s1698 + $0x40] sm:$0xff]
    %v1708 = vld [vmem:[%s1698 + $0x48] sm:$0xff]
    %v1709 = vld [vmem:[%s1698 + $0x50] sm:$0xff]
    %v1710 = vld [vmem:[%s1698 + $0x58] sm:$0xff]
    %v1711 = vld [vmem:[%s1698 + $0x60] sm:$0xff]
    %v1712 = vld [vmem:[%s1698 + $0x68] sm:$0xff]
    %v1713 = vld [vmem:[%s1698 + $0x70] sm:$0xff]
    %v1714 = vld [vmem:[%s1698 + $0x78] sm:$0xff]
    %v1715 = vld [vmem:[%s1698 + $0x80] sm:$0xff]
    %v1716 = vld [vmem:[%s1698 + $0x88] sm:$0xff]
    %v1717 = vld [vmem:[%s1698 + $0x90] sm:$0xff]
    %v1718 = vld [vmem:[%s1698 + $0x98] sm:$0xff]
    %v1719 = vld [vmem:[%s1698 + $0xa0] sm:$0xff]
    %v1720 = vld [vmem:[%s1698 + $0xa8] sm:$0xff]
    %v1721 = vld [vmem:[%s1698 + $0xb0] sm:$0xff]
    %v1722 = vld [vmem:[%s1698 + $0xb8] sm:$0xff]
    %v1723 = vld [vmem:[%s1698 + $0xc0] sm:$0xff]
    %v1724 = vld [vmem:[%s1698 + $0xc8] sm:$0xff]
    %v1725 = vld [vmem:[%s1698 + $0xd0] sm:$0xff]
    %v1726 = vld [vmem:[%s1698 + $0xd8] sm:$0xff]
    %v1727 = vld [vmem:[%s1698 + $0xe0] sm:$0xff]
    %v1728 = vld [vmem:[%s1698 + $0xe8] sm:$0xff]
    %v1729 = vld [vmem:[%s1698 + $0xf0] sm:$0xff]
    %v1730 = vld [vmem:[%s1698 + $0xf8] sm:$0xff]
    %v1731 = vrot.slane %v942, 7
    %v1732 = vrot.slane %v943, 7
    %1735 = vmatprep.subr.mxu0 0.0
    %1736 = vmatpush1.msra.mxu0 %v1714
    %1737 = vmatprep.subr.mxu0 0.0
    %1738 = vmatpush1.msra.mxu0 %v1713
    %1739 = vmatprep.subr.mxu0 0.0
    %1740 = vmatpush1.msra.mxu0 %v1712
    %1741 = vmatprep.subr.mxu0 0.0
    %1742 = vmatpush1.msra.mxu0 %v1711
    %1743 = vmatprep.subr.mxu0 0.0
    %1744 = vmatpush1.msra.mxu0 %v1710
    %1745 = vmatprep.subr.mxu0 0.0
    %1746 = vmatpush1.msra.mxu0 %v1709
    %1747 = vmatprep.subr.mxu0 0.0
    %1748 = vmatpush1.msra.mxu0 %v1708
    %1749 = vmatprep.subr.mxu0 0.0
    %1750 = vmatpush1.msra.mxu0 %v1707
    %1751 = vmatprep.subr.mxu0 0.0
    %1752 = vmatpush1.msra.mxu0 %v1706
    %1753 = vmatprep.subr.mxu0 0.0
    %1754 = vmatpush1.msra.mxu0 %v1705
    %1755 = vmatprep.subr.mxu0 0.0
    %1756 = vmatpush1.msra.mxu0 %v1704
    %1757 = vmatprep.subr.mxu0 0.0
    %1758 = vmatpush1.msra.mxu0 %v1703
    %1759 = vmatprep.subr.mxu0 0.0
    %1760 = vmatpush1.msra.mxu0 %v1702
    %1761 = vmatprep.subr.mxu0 0.0
    %1762 = vmatpush1.msra.mxu0 %v1701
    %1763 = vmatprep.subr.mxu0 0.0
    %1764 = vmatpush1.msra.mxu0 %v1700
    %1765 = vmatprep.subr.mxu0 0.0
    %1766 = vmatpush1.msra.mxu0 %v1699
    %1767 = vmatprep.subr.mxu0 0.0
    %1768 = vmatpush2.msra.mxu0 %v1730
    %1769 = vmatprep.subr.mxu0 0.0
    %1770 = vmatpush2.msra.mxu0 %v1729
    %1771 = vmatprep.subr.mxu0 0.0
    %1772 = vmatpush2.msra.mxu0 %v1728
    %1773 = vmatprep.subr.mxu0 0.0
    %1774 = vmatpush2.msra.mxu0 %v1727
    %1775 = vmatprep.subr.mxu0 0.0
    %1776 = vmatpush2.msra.mxu0 %v1726
    %1777 = vmatprep.subr.mxu0 0.0
    %1778 = vmatpush2.msra.mxu0 %v1725
    %1779 = vmatprep.subr.mxu0 0.0
    %1780 = vmatpush2.msra.mxu0 %v1724
    %1781 = vmatprep.subr.mxu0 0.0
    %1782 = vmatpush2.msra.mxu0 %v1723
    %1783 = vmatprep.subr.mxu0 0.0
    %1784 = vmatpush2.msra.mxu0 %v1722
    %1785 = vmatprep.subr.mxu0 0.0
    %1786 = vmatpush2.msra.mxu0 %v1721
    %1787 = vmatprep.subr.mxu0 0.0
    %1788 = vmatpush2.msra.mxu0 %v1720
    %1789 = vmatprep.subr.mxu0 0.0
    %1790 = vmatpush2.msra.mxu0 %v1719
    %1791 = vmatprep.subr.mxu0 0.0
    %1792 = vmatpush2.msra.mxu0 %v1718
    %1793 = vmatprep.subr.mxu0 0.0
    %1794 = vmatpush2.msra.mxu0 %v1717
    %1795 = vmatprep.subr.mxu0 0.0
    %1796 = vmatpush2.msra.mxu0 %v1716
    %1797 = vmatprep.subr.mxu0 0.0
    %1798 = vmatpush2.msra.mxu0 %v1715
    %1799 = vmatprep.mubr.f32.mxu0 %v1732
    %1800 = vmatmul.mubr.f32.gmra.mxu0 %v1731
    %v1801 = vpop.f32.mrf.mxu0
    %v1802 = vadd.f32 0.0, %v1801
    %v1803 = vpop.f32.mrf.mxu0
    %1804 = vdwg.mxu0
    %v1805 = vadd.f32 %v1697, %v1802
    %v1806 = vmax.f32 %v1805, 0.0
    %vm1807 = vcmask 253952
    %1808 = vst.msk [vmem:[#allocation4] sm:$0x1] %vm1807, %v1806
    %v1809 = vld [vmem:[%s4] sm:$0xff]
    %v1810 = vld [vmem:[%s4 + $0x8] sm:$0xff]
    %v1811 = vld [vmem:[%s4 + $0x10] sm:$0xff]
    %v1812 = vld [vmem:[%s4 + $0x18] sm:$0xff]
    %v1813 = vld [vmem:[%s5] sm:$0x1]
    %vm1814 = vcmask 261120
    %v1816 = vsel %vm1814, %v1806, 0
    %1818 = vmatprep.subr.mxu0 0.0
    %1819 = vmatpush1.msra.mxu0 0.0
    %1820 = vmatprep.subr.mxu0 0.0
    %1821 = vmatpush1.msra.mxu0 0.0
    %1822 = vmatprep.subr.mxu0 0.0
    %1823 = vmatpush1.msra.mxu0 0.0
    %1824 = vmatprep.subr.mxu0 0.0
    %1825 = vmatpush1.msra.mxu0 0.0
    %1826 = vmatprep.subr.mxu0 0.0
    %1827 = vmatpush1.msra.mxu0 0.0
    %1828 = vmatprep.subr.mxu0 0.0
    %1829 = vmatpush1.msra.mxu0 0.0
    %1830 = vmatprep.subr.mxu0 0.0
    %1831 = vmatpush1.msra.mxu0 0.0
    %1832 = vmatprep.subr.mxu0 0.0
    %1833 = vmatpush1.msra.mxu0 0.0
    %1834 = vmatprep.subr.mxu0 0.0
    %1835 = vmatpush1.msra.mxu0 0.0
    %1836 = vmatprep.subr.mxu0 0.0
    %1837 = vmatpush1.msra.mxu0 0.0
    %1838 = vmatprep.subr.mxu0 0.0
    %1839 = vmatpush1.msra.mxu0 0.0
    %1840 = vmatprep.subr.mxu0 0.0
    %1841 = vmatpush1.msra.mxu0 0.0
    %1842 = vmatprep.subr.mxu0 0.0
    %1843 = vmatpush1.msra.mxu0 %v1812
    %1844 = vmatprep.subr.mxu0 0.0
    %1845 = vmatpush1.msra.mxu0 %v1811
    %1846 = vmatprep.subr.mxu0 0.0
    %1847 = vmatpush1.msra.mxu0 %v1810
    %1848 = vmatprep.subr.mxu0 0.0
    %1849 = vmatpush1.msra.mxu0 %v1809
    %1850 = vmatprep.subr.mxu0 0.0
    %1851 = vmatpush2.msra.mxu0 0.0
    %1852 = vmatprep.subr.mxu0 0.0
    %1853 = vmatpush2.msra.mxu0 0.0
    %1854 = vmatprep.subr.mxu0 0.0
    %1855 = vmatpush2.msra.mxu0 0.0
    %1856 = vmatprep.subr.mxu0 0.0
    %1857 = vmatpush2.msra.mxu0 0.0
    %1858 = vmatprep.subr.mxu0 0.0
    %1859 = vmatpush2.msra.mxu0 0.0
    %1860 = vmatprep.subr.mxu0 0.0
    %1861 = vmatpush2.msra.mxu0 0.0
    %1862 = vmatprep.subr.mxu0 0.0
    %1863 = vmatpush2.msra.mxu0 0.0
    %1864 = vmatprep.subr.mxu0 0.0
    %1865 = vmatpush2.msra.mxu0 0.0
    %1866 = vmatprep.subr.mxu0 0.0
    %1867 = vmatpush2.msra.mxu0 0.0
    %1868 = vmatprep.subr.mxu0 0.0
    %1869 = vmatpush2.msra.mxu0 0.0
    %1870 = vmatprep.subr.mxu0 0.0
    %1871 = vmatpush2.msra.mxu0 0.0
    %1872 = vmatprep.subr.mxu0 0.0
    %1873 = vmatpush2.msra.mxu0 0.0
    %1874 = vmatprep.subr.mxu0 0.0
    %1875 = vmatpush2.msra.mxu0 0.0
    %1876 = vmatprep.subr.mxu0 0.0
    %1877 = vmatpush2.msra.mxu0 0.0
    %1878 = vmatprep.subr.mxu0 0.0
    %1879 = vmatpush2.msra.mxu0 0.0
    %1880 = vmatprep.subr.mxu0 0.0
    %1881 = vmatpush2.msra.mxu0 0.0
    %1882 = vmatprep.mubr.f32.mxu0 0.0
    %1883 = vmatmul.mubr.f32.gmra.mxu0 %v1816
    %v1884 = vpop.f32.mrf.mxu0
    %v1885 = vadd.f32 %v1813, %v1884
    %v1886 = vpop.f32.mrf.mxu0
    %1887 = vdwg.mxu0
    %vm1888 = vcmask 73728
    %1889 = vst.msk [vmem:[#allocation2] sm:$0x1] %vm1888, %v1885
    // Predicated region
    $region26: #{fwd.1} parent=1 // pred_check
      _
    $region27: #{fwd.1} parent=1 // pred_check_branch
      %1891 = sbr.rel (0) target = $region29
    $region28: #{fwd.1} parent=1 // pred_region
      %s1893 = ssub.s32 16, 16
      %1894 = vsyncadd [#allocation3], %s1893
      %s1896 = sshll.u32 [#allocation2], 4
      %s1897 = int_to_ptr.vmem [resolvable:$true] %s1896
      %1899 = dma.vmem_to_hbm [thread:$0]  %s1897, 16, %s6, [#allocation3]
    $region29: #{fwd.1} parent=1 // pred_fallthru
      _
    // Predicated region
    $region30: #{fwd.1} parent=1 // pred_check
      _
    $region31: #{fwd.1} parent=1 // pred_check_branch
      %1901 = sbr.rel (0) target = $region33
    $region32: #{fwd.1} parent=1 // pred_region
      %s1903 = ssub.s32 16, 16
      %1904 = vsyncadd [#allocation5], %s1903
      %s1906 = sshll.u32 [#allocation4], 4
      %s1907 = int_to_ptr.vmem [resolvable:$true] %s1906
      %1909 = dma.vmem_to_hbm [thread:$0]  %s1907, 16, %s7, [#allocation5]
    $region33: #{fwd.1} parent=1 // pred_fallthru
      _
    // Predicated region
    $region34: #{fwd.1} parent=1 // pred_check
      _
    $region35: #{fwd.1} parent=1 // pred_check_branch
      %1911 = sbr.rel (0) target = $region37
    $region36: #{fwd.1} parent=1 // pred_region
      %1912 = dma.done [#allocation3], 16
    $region37: #{fwd.1} parent=1 // pred_fallthru
      _
    // Predicated region
    $region38: #{fwd.1} parent=1 // pred_check
      _
    $region39: #{fwd.1} parent=1 // pred_check_branch
      %1914 = sbr.rel (0) target = $region41
    $region40: #{fwd.1} parent=1 // pred_region
      %1915 = dma.done [#allocation5], 16
    $region41: #{fwd.1} parent=1 // pred_fallthru
      _
    %1916 = vsyncpa [#allocation3], 1
    %1917 = vsyncpa [#allocation5], 1

</llo_original>
